<compile_context>
chip_gen: v7x
topology: tpu7x:2x2x1
jax: 0.10.0
libtpu: 0.0.40
codegen_flags: <defaults>
</compile_context>

<pallas_src>
import functools

import jax
import jax.numpy as jnp
from jax import lax
from jax.experimental import pallas as pl
from jax.experimental.pallas import tpu as pltpu

BN_EPS = 1e-5
GIN_EPS = 0.0        # GINConv default (train_eps=False)
LANE = 128


def _round_up(v, m):
    return (v + m - 1) // m * m


def _make_gin_mlp_kernel(n_valid, tm):
    """Kernel A: GIN aggregation + 2-layer MLP + ReLU + per-tile BN stats."""

    def kernel(adj_ref, xhi_ref, xlo_ref, w1_ref, b1_ref, w2_ref, b2_ref,
               y_ref, sum_ref, sumsq_ref):
        # Read program_id ONCE, at top level (never inside nested control flow).
        i = pl.program_id(0)

        adj = adj_ref[...]                                    # [tm, N_p] bf16
        # (adj + (1+eps)I) @ x on the bf16 MXU path.  x = x_hi + x_lo (both
        # bf16) keeps ~f32 accuracy; adjacency counts are exact in bf16.
        h = jnp.dot(adj, xhi_ref[...], preferred_element_type=jnp.float32)
        h = h + jnp.dot(adj, xlo_ref[...], preferred_element_type=jnp.float32)

        # GIN "nn": Linear -> ReLU -> Linear, then the outer ReLU.
        z1 = jnp.dot(h, w1_ref[...], preferred_element_type=jnp.float32)
        z1 = jnp.maximum(z1 + b1_ref[...], 0.0)               # [tm, Cout_p]
        z2 = jnp.dot(z1, w2_ref[...], preferred_element_type=jnp.float32)
        y = jnp.maximum(z2 + b2_ref[...], 0.0)
        y_ref[...] = y                                         # lane-dense vst

        # BatchNorm statistics over *valid* node rows of this tile only
        # (padded rows would otherwise pollute mean/var).
        rows = lax.broadcasted_iota(jnp.int32, y.shape, 0) + i * tm
        ym = jnp.where(rows < n_valid, y, 0.0)
        sum_ref[...] = jnp.sum(ym, axis=0, keepdims=True)[None]
        sumsq_ref[...] = jnp.sum(ym * ym, axis=0, keepdims=True)[None]

    return kernel


def _bn_apply_kernel(y_ref, scale_ref, shift_ref, out_ref):
    """Kernel B: fused BatchNorm affine: out = y * scale + shift (in place)."""
    out_ref[...] = y_ref[...] * scale_ref[...] + shift_ref[...]


@functools.partial(jax.jit, static_argnames=("tm",))
def graph_iso_bn(x, edge_index, params, *, tm=256):
    """x: [N, C_in] f32, edge_index: [2, E] i32. Returns new features [N, C_out]."""
    n, c_in = x.shape
    e = edge_index.shape[1]
    w1, b1, w2, b2, gamma, beta = params
    c_out = w1.shape[1]

    tm = min(tm, _round_up(n, 8))
    n_p = _round_up(n, tm)
    c_in_p = _round_up(c_in, LANE)
    c_out_p = _round_up(c_out, LANE)
    n_i = n_p // tm

    # --- lane-pad channels to 128 and nodes to a tile multiple (zeros).
    x_p = jnp.zeros((n_p, c_in_p), jnp.float32).at[:n, :c_in].set(x)
    # bf16 hi/lo split of x so the aggregation matmul uses the bf16 MXU path
    # at ~f32 accuracy (total HBM bytes == one f32 copy of x).
    x_hi = x_p.astype(jnp.bfloat16)
    x_lo = (x_p - x_hi.astype(jnp.float32)).astype(jnp.bfloat16)

    w1_p = jnp.zeros((c_in_p, c_out_p), jnp.float32).at[:c_in, :c_out].set(w1)
    w2_p = jnp.zeros((c_out_p, c_out_p), jnp.float32).at[:c_out, :c_out].set(w2)
    b1_p = jnp.zeros((1, c_out_p), jnp.float32).at[0, :c_out].set(b1)
    b2_p = jnp.zeros((1, c_out_p), jnp.float32).at[0, :c_out].set(b2)
    gamma_p = jnp.zeros((c_out_p,), jnp.float32).at[:c_out].set(gamma)
    beta_p = jnp.zeros((c_out_p,), jnp.float32).at[:c_out].set(beta)

    # Dense augmented adjacency, scattered straight into bf16, with the
    # (1 + eps) self term folded into the same scatter (no eye temporary):
    #   adj_aug[i, j] = #edges j->i  (+ (1+eps) on the diagonal)
    src, dst = edge_index[0], edge_index[1]
    diag = jnp.arange(n, dtype=edge_index.dtype)
    rows_idx = jnp.concatenate([dst, diag])
    cols_idx = jnp.concatenate([src, diag])
    vals = jnp.concatenate([
        jnp.ones((e,), jnp.bfloat16),
        jnp.full((n,), 1.0 + GIN_EPS, jnp.bfloat16),
    ])
    adj = jnp.zeros((n_p, n_p), jnp.bfloat16).at[rows_idx, cols_idx].add(vals)

    cost_a = pl.CostEstimate(
        flops=(2 * (2 * n_p * n_p * c_in_p)            # hi + lo aggregation
               + 2 * n_p * c_in_p * c_out_p
               + 2 * n_p * c_out_p * c_out_p),
        transcendentals=0,
        bytes_accessed=(n_p * n_p * 2                  # adj (bf16), read once
                        + 2 * n_p * c_in_p * 2         # x hi+lo (bf16), resident
                        + (c_in_p + c_out_p) * c_out_p * 4 + 2 * c_out_p * 4
                        + n_p * c_out_p * 4            # y written
                        + 2 * n_i * c_out_p * 4),      # tile stats
    )

    y, tile_sum, tile_sumsq = pl.pallas_call(
        _make_gin_mlp_kernel(n, tm),
        out_shape=(
            jax.ShapeDtypeStruct((n_p, c_out_p), jnp.float32),
            jax.ShapeDtypeStruct((n_i, 1, c_out_p), jnp.float32),
            jax.ShapeDtypeStruct((n_i, 1, c_out_p), jnp.float32),
        ),
        grid_spec=pltpu.PrefetchScalarGridSpec(
            num_scalar_prefetch=0,
            grid=(n_i,),
            in_specs=[
                pl.BlockSpec((tm, n_p), lambda i: (i, 0)),            # adj row-slab
                pl.BlockSpec((n_p, c_in_p), lambda i: (0, 0)),        # x_hi (resident)
                pl.BlockSpec((n_p, c_in_p), lambda i: (0, 0)),        # x_lo (resident)
                pl.BlockSpec((c_in_p, c_out_p), lambda i: (0, 0)),    # W1
                pl.BlockSpec((1, c_out_p), lambda i: (0, 0)),         # b1
                pl.BlockSpec((c_out_p, c_out_p), lambda i: (0, 0)),   # W2
                pl.BlockSpec((1, c_out_p), lambda i: (0, 0)),         # b2
            ],
            out_specs=[
                pl.BlockSpec((tm, c_out_p), lambda i: (i, 0)),        # y
                pl.BlockSpec((1, 1, c_out_p), lambda i: (i, 0, 0)),   # sum
                pl.BlockSpec((1, 1, c_out_p), lambda i: (i, 0, 0)),   # sumsq
            ],
        ),
        compiler_params=pltpu.CompilerParams(
            dimension_semantics=("parallel",)),
        cost_estimate=cost_a,
    )(adj, x_hi, x_lo, w1_p, b1_p, w2_p, b2_p)

    # --- tiny O(C) glue: tile stats -> per-channel BN scale/shift.
    total = jnp.sum(tile_sum, axis=(0, 1))
    total_sq = jnp.sum(tile_sumsq, axis=(0, 1))
    mean = total / n
    var = jnp.maximum(total_sq / n - mean * mean, 0.0)    # biased variance
    scale = gamma_p * lax.rsqrt(var + BN_EPS)
    shift = beta_p - mean * scale

    # BN apply: pure HBM streaming; use large row blocks and write in place of y.
    tb = tm
    while tb * 2 <= min(n_p, 1024) and n_p % (tb * 2) == 0:
        tb *= 2
    n_b = n_p // tb

    cost_b = pl.CostEstimate(
        flops=2 * n_p * c_out_p, transcendentals=0,
        bytes_accessed=2 * n_p * c_out_p * 4 + 2 * c_out_p * 4)

    out = pl.pallas_call(
        _bn_apply_kernel,
        out_shape=jax.ShapeDtypeStruct((n_p, c_out_p), jnp.float32),
        grid_spec=pltpu.PrefetchScalarGridSpec(
            num_scalar_prefetch=0,
            grid=(n_b,),
            in_specs=[
                pl.BlockSpec((tb, c_out_p), lambda i: (i, 0)),
                pl.BlockSpec((1, c_out_p), lambda i: (0, 0)),
                pl.BlockSpec((1, c_out_p), lambda i: (0, 0)),
            ],
            out_specs=pl.BlockSpec((tb, c_out_p), lambda i: (i, 0)),
        ),
        compiler_params=pltpu.CompilerParams(
            dimension_semantics=("parallel",)),
        input_output_aliases={0: 0},          # overwrite y in place
        cost_estimate=cost_b,
    )(y, scale.reshape(1, c_out_p), shift.reshape(1, c_out_p))

    return out[:n, :c_out]


def init_params(key, in_channels, out_channels):
    """Deterministic param init (PyTorch-Linear-style uniform ranges)."""
    k1, k2, k3, k4 = jax.random.split(key, 4)
    lim1 = 1.0 / jnp.sqrt(in_channels)
    lim2 = 1.0 / jnp.sqrt(out_channels)
    w1 = jax.random.uniform(k1, (in_channels, out_channels), jnp.float32, -lim1, lim1)
    b1 = jax.random.uniform(k2, (out_channels,), jnp.float32, -lim1, lim1)
    w2 = jax.random.uniform(k3, (out_channels, out_channels), jnp.float32, -lim2, lim2)
    b2 = jax.random.uniform(k4, (out_channels,), jnp.float32, -lim2, lim2)
    gamma = jnp.ones((out_channels,), jnp.float32)   # BatchNorm1d weight init
    beta = jnp.zeros((out_channels,), jnp.float32)   # BatchNorm1d bias init
    return (w1, b1, w2, b2, gamma, beta)


def reference(x, edge_index, params):
    """Pure-JAX reference (full-f32 matmuls) for a sanity check."""
    w1, b1, w2, b2, gamma, beta = params
    src, dst = edge_index[0], edge_index[1]
    agg = jnp.zeros_like(x).at[dst].add(x[src])
    h = (1.0 + GIN_EPS) * x + agg
    hi = lax.Precision.HIGHEST
    z1 = jnp.maximum(jnp.dot(h, w1, precision=hi) + b1, 0.0)
    z2 = jnp.dot(z1, w2, precision=hi) + b2
    y = jnp.maximum(z2, 0.0)
    mean = y.mean(axis=0, keepdims=True)
    var = ((y - mean) ** 2).mean(axis=0, keepdims=True)
    return gamma * (y - mean) / jnp.sqrt(var + BN_EPS) + beta


if __name__ == "__main__":
    # Small demo graph: 256 nodes, 1024 random edges.
    N, E = 256, 1024
    IN_CH, OUT_CH = 8, 32

    key = jax.random.PRNGKey(0)
    kx, ke, kp = jax.random.split(key, 3)

    x = jax.random.normal(kx, (N, IN_CH), jnp.float32)
    edge_index = jax.random.randint(ke, (2, E), 0, N, jnp.int32)
    params = init_params(kp, IN_CH, OUT_CH)

    out = graph_iso_bn(x, edge_index, params)
    out = jax.block_until_ready(out)

    ref = reference(x, edge_index, params)
    assert out.shape == (N, OUT_CH)
    max_err = float(jnp.max(jnp.abs(out - ref)))
    # Outputs are BatchNorm-normalized (unit-ish scale).  The bf16 hi/lo split
    # keeps the aggregation at ~f32 accuracy; 2e-3 absolute covers MXU
    # accumulation-order / pass-decomposition differences while still catching
    # any real bug (those show up as O(0.1+) errors).
    assert max_err < 2e-3, f"mismatch vs reference: max abs err {max_err}"

    print("KERNEL_OK")
</pallas_src>

<mosaic_0001>
module attributes {stable_mosaic.version = 11 : i64} {
  func.func @_bn_apply_kernel(%arg0: i32, %arg1: memref<256x128xf32, #tpu.memory_space<vmem>>, %arg2: memref<1x128xf32, #tpu.memory_space<vmem>>, %arg3: memref<1x128xf32, #tpu.memory_space<vmem>>, %arg4: memref<256x128xf32, #tpu.memory_space<vmem>>) attributes {dimension_semantics = [#tpu.dimension_semantics<parallel>], iteration_bounds = array<i64: 1>, scalar_prefetch = 0 : i64, scratch_operands = 0 : i64, tpu.core_type = #tpu.core_type<tc>, window_params = [{transform_indices = @transform_0, window_bounds = array<i64: 256, 128>}, {pipeline_mode = #tpu.pipeline_mode<synchronous>, transform_indices = @transform_1, window_bounds = array<i64: 1, 128>}, {pipeline_mode = #tpu.pipeline_mode<synchronous>, transform_indices = @transform_2, window_bounds = array<i64: 1, 128>}, {transform_indices = @transform_3, window_bounds = array<i64: 256, 128>}]} {
    %c0 = arith.constant 0 : index
    %c0_0 = arith.constant 0 : index
    %0 = vector.load %arg1[%c0, %c0_0] : memref<256x128xf32, #tpu.memory_space<vmem>>, vector<256x128xf32>
    %c0_1 = arith.constant 0 : index
    %c0_2 = arith.constant 0 : index
    %1 = vector.load %arg2[%c0_1, %c0_2] : memref<1x128xf32, #tpu.memory_space<vmem>>, vector<1x128xf32>
    %2 = vector.broadcast %1 : vector<1x128xf32> to vector<256x128xf32>
    %3 = arith.mulf %0, %2 : vector<256x128xf32>
    %c0_3 = arith.constant 0 : index
    %c0_4 = arith.constant 0 : index
    %4 = vector.load %arg3[%c0_3, %c0_4] : memref<1x128xf32, #tpu.memory_space<vmem>>, vector<1x128xf32>
    %5 = vector.broadcast %4 : vector<1x128xf32> to vector<256x128xf32>
    %6 = arith.addf %3, %5 : vector<256x128xf32>
    %c0_5 = arith.constant 0 : index
    %c0_6 = arith.constant 0 : index
    %7 = vector.load %arg4[%c0_5, %c0_6] : memref<256x128xf32, #tpu.memory_space<vmem>>, vector<256x128xf32>
    tpu.vector_store %arg4[%c0_5, %c0_6], %6 {strides = array<i32>} : memref<256x128xf32, #tpu.memory_space<vmem>>, vector<256x128xf32>,
    return
  }
  func.func @transform_0(%arg0: i32) -> (i32, i32) {
    %c0_i32 = arith.constant 0 : i32
    %c0_i32_0 = arith.constant 0 : i32
    return %arg0, %c0_i32 : i32, i32
  }
  func.func @transform_1(%arg0: i32) -> (i32, i32) {
    %c0_i32 = arith.constant 0 : i32
    %c0_i32_0 = arith.constant 0 : i32
    %c0_i32_1 = arith.constant 0 : i32
    return %c0_i32, %c0_i32_0 : i32, i32
  }
  func.func @transform_2(%arg0: i32) -> (i32, i32) {
    %c0_i32 = arith.constant 0 : i32
    %c0_i32_0 = arith.constant 0 : i32
    %c0_i32_1 = arith.constant 0 : i32
    return %c0_i32, %c0_i32_0 : i32, i32
  }
  func.func @transform_3(%arg0: i32) -> (i32, i32) {
    %c0_i32 = arith.constant 0 : i32
    %c0_i32_0 = arith.constant 0 : i32
    return %arg0, %c0_i32 : i32, i32
  }
}

module attributes {stable_mosaic.version = 11 : i64} {
  func.func @kernel(%arg0: i32, %arg1: memref<256x256xbf16, #tpu.memory_space<vmem>>, %arg2: memref<256x128xbf16, #tpu.memory_space<vmem>>, %arg3: memref<256x128xbf16, #tpu.memory_space<vmem>>, %arg4: memref<128x128xf32, #tpu.memory_space<vmem>>, %arg5: memref<1x128xf32, #tpu.memory_space<vmem>>, %arg6: memref<128x128xf32, #tpu.memory_space<vmem>>, %arg7: memref<1x128xf32, #tpu.memory_space<vmem>>, %arg8: memref<256x128xf32, #tpu.memory_space<vmem>>, %arg9: memref<1x1x128xf32, #tpu.memory_space<vmem>>, %arg10: memref<1x1x128xf32, #tpu.memory_space<vmem>>) attributes {dimension_semantics = [#tpu.dimension_semantics<parallel>], iteration_bounds = array<i64: 1>, scalar_prefetch = 0 : i64, scratch_operands = 0 : i64, tpu.core_type = #tpu.core_type<tc>, window_params = [{transform_indices = @transform_0, window_bounds = array<i64: 256, 256>}, {pipeline_mode = #tpu.pipeline_mode<synchronous>, transform_indices = @transform_1, window_bounds = array<i64: 256, 128>}, {pipeline_mode = #tpu.pipeline_mode<synchronous>, transform_indices = @transform_2, window_bounds = array<i64: 256, 128>}, {pipeline_mode = #tpu.pipeline_mode<synchronous>, transform_indices = @transform_3, window_bounds = array<i64: 128, 128>}, {pipeline_mode = #tpu.pipeline_mode<synchronous>, transform_indices = @transform_4, window_bounds = array<i64: 1, 128>}, {pipeline_mode = #tpu.pipeline_mode<synchronous>, transform_indices = @transform_5, window_bounds = array<i64: 128, 128>}, {pipeline_mode = #tpu.pipeline_mode<synchronous>, transform_indices = @transform_6, window_bounds = array<i64: 1, 128>}, {transform_indices = @transform_7, window_bounds = array<i64: 256, 128>}, {transform_indices = @transform_8, window_bounds = array<i64: 1, 1, 128>}, {transform_indices = @transform_9, window_bounds = array<i64: 1, 1, 128>}]} {
    %c0 = arith.constant 0 : index
    %c0_0 = arith.constant 0 : index
    %0 = vector.load %arg1[%c0, %c0_0] : memref<256x256xbf16, #tpu.memory_space<vmem>>, vector<256x256xbf16>
    %c0_1 = arith.constant 0 : index
    %c0_2 = arith.constant 0 : index
    %1 = vector.load %arg2[%c0_1, %c0_2] : memref<256x128xbf16, #tpu.memory_space<vmem>>, vector<256x128xbf16>
    %cst = arith.constant dense<0.000000e+00> : vector<256x128xf32>
    %2 = tpu.matmul %0, %1, %cst {dimension_numbers = #tpu.dot_dimension_numbers<[1], [0], [0], [1], [0, 0, 1, 1], [], []>} : vector<256x256xbf16>, vector<256x128xbf16>, vector<256x128xf32> -> vector<256x128xf32>
    %c0_3 = arith.constant 0 : index
    %c0_4 = arith.constant 0 : index
    %3 = vector.load %arg3[%c0_3, %c0_4] : memref<256x128xbf16, #tpu.memory_space<vmem>>, vector<256x128xbf16>
    %cst_5 = arith.constant dense<0.000000e+00> : vector<256x128xf32>
    %4 = tpu.matmul %0, %3, %cst_5 {dimension_numbers = #tpu.dot_dimension_numbers<[1], [0], [0], [1], [0, 0, 1, 1], [], []>} : vector<256x256xbf16>, vector<256x128xbf16>, vector<256x128xf32> -> vector<256x128xf32>
    %5 = arith.addf %2, %4 : vector<256x128xf32>
    %c0_6 = arith.constant 0 : index
    %c0_7 = arith.constant 0 : index
    %6 = vector.load %arg4[%c0_6, %c0_7] : memref<128x128xf32, #tpu.memory_space<vmem>>, vector<128x128xf32>
    %cst_8 = arith.constant dense<0.000000e+00> : vector<256x128xf32>
    %7 = tpu.matmul %5, %6, %cst_8 {dimension_numbers = #tpu.dot_dimension_numbers<[1], [0], [0], [1], [0, 0, 1, 1], [], []>} : vector<256x128xf32>, vector<128x128xf32>, vector<256x128xf32> -> vector<256x128xf32>
    %c0_9 = arith.constant 0 : index
    %c0_10 = arith.constant 0 : index
    %8 = vector.load %arg5[%c0_9, %c0_10] : memref<1x128xf32, #tpu.memory_space<vmem>>, vector<1x128xf32>
    %9 = vector.broadcast %8 : vector<1x128xf32> to vector<256x128xf32>
    %10 = arith.addf %7, %9 : vector<256x128xf32>
    %cst_11 = arith.constant 0.000000e+00 : f32
    %11 = vector.broadcast %cst_11 : f32 to vector<256x128xf32>
    %12 = arith.maximumf %10, %11 : vector<256x128xf32>
    %c0_12 = arith.constant 0 : index
    %c0_13 = arith.constant 0 : index
    %13 = vector.load %arg6[%c0_12, %c0_13] : memref<128x128xf32, #tpu.memory_space<vmem>>, vector<128x128xf32>
    %cst_14 = arith.constant dense<0.000000e+00> : vector<256x128xf32>
    %14 = tpu.matmul %12, %13, %cst_14 {dimension_numbers = #tpu.dot_dimension_numbers<[1], [0], [0], [1], [0, 0, 1, 1], [], []>} : vector<256x128xf32>, vector<128x128xf32>, vector<256x128xf32> -> vector<256x128xf32>
    %c0_15 = arith.constant 0 : index
    %c0_16 = arith.constant 0 : index
    %15 = vector.load %arg7[%c0_15, %c0_16] : memref<1x128xf32, #tpu.memory_space<vmem>>, vector<1x128xf32>
    %16 = vector.broadcast %15 : vector<1x128xf32> to vector<256x128xf32>
    %17 = arith.addf %14, %16 : vector<256x128xf32>
    %cst_17 = arith.constant 0.000000e+00 : f32
    %18 = vector.broadcast %cst_17 : f32 to vector<256x128xf32>
    %19 = arith.maximumf %17, %18 : vector<256x128xf32>
    %c0_18 = arith.constant 0 : index
    %c0_19 = arith.constant 0 : index
    %20 = vector.load %arg8[%c0_18, %c0_19] : memref<256x128xf32, #tpu.memory_space<vmem>>, vector<256x128xf32>
    tpu.vector_store %arg8[%c0_18, %c0_19], %19 {strides = array<i32>} : memref<256x128xf32, #tpu.memory_space<vmem>>, vector<256x128xf32>,
    %21 = tpu.iota {dimensions = array<i32: 0>} : vector<256x128xi32>
    %c256_i32 = arith.constant 256 : i32
    %22 = arith.muli %arg0, %c256_i32 : i32
    %23 = vector.broadcast %22 : i32 to vector<256x128xi32>
    %24 = arith.addi %21, %23 : vector<256x128xi32>
    %c256_i32_20 = arith.constant 256 : i32
    %25 = vector.broadcast %c256_i32_20 : i32 to vector<256x128xi32>
    %26 = arith.cmpi slt, %24, %25 : vector<256x128xi32>
    %cst_21 = arith.constant 0.000000e+00 : f32
    %27 = vector.broadcast %cst_21 : f32 to vector<256x128xf32>
    %28 = arith.select %26, %19, %27 : vector<256x128xi1>, vector<256x128xf32>
    %cst_22 = arith.constant dense<0.000000e+00> : vector<128xf32>
    %29 = vector.multi_reduction <add>, %28, %cst_22 [0] : vector<256x128xf32> to vector<128xf32>
    %30 = vector.shape_cast %29 : vector<128xf32> to vector<1x128xf32>
    %31 = vector.shape_cast %30 : vector<1x128xf32> to vector<1x1x128xf32>
    %c0_23 = arith.constant 0 : index
    %c0_24 = arith.constant 0 : index
    %c0_25 = arith.constant 0 : index
    %32 = vector.load %arg9[%c0_23, %c0_24, %c0_25] : memref<1x1x128xf32, #tpu.memory_space<vmem>>, vector<1x1x128xf32>
    tpu.vector_store %arg9[%c0_23, %c0_24, %c0_25], %31 {strides = array<i32>} : memref<1x1x128xf32, #tpu.memory_space<vmem>>, vector<1x1x128xf32>,
    %33 = arith.mulf %28, %28 : vector<256x128xf32>
    %cst_26 = arith.constant dense<0.000000e+00> : vector<128xf32>
    %34 = vector.multi_reduction <add>, %33, %cst_26 [0] : vector<256x128xf32> to vector<128xf32>
    %35 = vector.shape_cast %34 : vector<128xf32> to vector<1x128xf32>
    %36 = vector.shape_cast %35 : vector<1x128xf32> to vector<1x1x128xf32>
    %c0_27 = arith.constant 0 : index
    %c0_28 = arith.constant 0 : index
    %c0_29 = arith.constant 0 : index
    %37 = vector.load %arg10[%c0_27, %c0_28, %c0_29] : memref<1x1x128xf32, #tpu.memory_space<vmem>>, vector<1x1x128xf32>
    tpu.vector_store %arg10[%c0_27, %c0_28, %c0_29], %36 {strides = array<i32>} : memref<1x1x128xf32, #tpu.memory_space<vmem>>, vector<1x1x128xf32>,
    return
  }
  func.func @transform_0(%arg0: i32) -> (i32, i32) {
    %c0_i32 = arith.constant 0 : i32
    %c0_i32_0 = arith.constant 0 : i32
    return %arg0, %c0_i32 : i32, i32
  }
  func.func @transform_1(%arg0: i32) -> (i32, i32) {
    %c0_i32 = arith.constant 0 : i32
    %c0_i32_0 = arith.constant 0 : i32
    %c0_i32_1 = arith.constant 0 : i32
    return %c0_i32, %c0_i32_0 : i32, i32
  }
  func.func @transform_2(%arg0: i32) -> (i32, i32) {
    %c0_i32 = arith.constant 0 : i32
    %c0_i32_0 = arith.constant 0 : i32
    %c0_i32_1 = arith.constant 0 : i32
    return %c0_i32, %c0_i32_0 : i32, i32
  }
  func.func @transform_3(%arg0: i32) -> (i32, i32) {
    %c0_i32 = arith.constant 0 : i32
    %c0_i32_0 = arith.constant 0 : i32
    %c0_i32_1 = arith.constant 0 : i32
    return %c0_i32, %c0_i32_0 : i32, i32
  }
  func.func @transform_4(%arg0: i32) -> (i32, i32) {
    %c0_i32 = arith.constant 0 : i32
    %c0_i32_0 = arith.constant 0 : i32
    %c0_i32_1 = arith.constant 0 : i32
    return %c0_i32, %c0_i32_0 : i32, i32
  }
  func.func @transform_5(%arg0: i32) -> (i32, i32) {
    %c0_i32 = arith.constant 0 : i32
    %c0_i32_0 = arith.constant 0 : i32
    %c0_i32_1 = arith.constant 0 : i32
    return %c0_i32, %c0_i32_0 : i32, i32
  }
  func.func @transform_6(%arg0: i32) -> (i32, i32) {
    %c0_i32 = arith.constant 0 : i32
    %c0_i32_0 = arith.constant 0 : i32
    %c0_i32_1 = arith.constant 0 : i32
    return %c0_i32, %c0_i32_0 : i32, i32
  }
  func.func @transform_7(%arg0: i32) -> (i32, i32) {
    %c0_i32 = arith.constant 0 : i32
    %c0_i32_0 = arith.constant 0 : i32
    return %arg0, %c0_i32 : i32, i32
  }
  func.func @transform_8(%arg0: i32) -> (i32, i32, i32) {
    %c0_i32 = arith.constant 0 : i32
    %c0_i32_0 = arith.constant 0 : i32
    %c0_i32_1 = arith.constant 0 : i32
    return %arg0, %c0_i32, %c0_i32_0 : i32, i32, i32
  }
  func.func @transform_9(%arg0: i32) -> (i32, i32, i32) {
    %c0_i32 = arith.constant 0 : i32
    %c0_i32_0 = arith.constant 0 : i32
    %c0_i32_1 = arith.constant 0 : i32
    return %arg0, %c0_i32, %c0_i32_0 : i32, i32, i32
  }
}

</mosaic_0001>

<llo_original>
// kernel: graph_iso_bn.3
$region0: #{graph_iso_bn.3}
  #allocation0 [shape = 'u32[]', space=smem, size = 0x4, offset = 0x4, fixed_abs, tag = 'smem constant byte address 0x4 - core index']
  #allocation1 [shape = 'u32[144,128]{1,0:T(1,128)}', space=vmem, size = 0x12000, scoped, tag = 'internal scratch']
  %s0 = inlined_call_operand.vmem [shape: f32[256,128], index: 0, kind: input, shape index: {}, may-alias: {0,3}]
  %s1 = inlined_call_operand.vmem [shape: f32[1,128], index: 1, kind: input, shape index: {}]
  %s2 = inlined_call_operand.vmem [shape: f32[1,128], index: 2, kind: input, shape index: {}]
  %s3 = inlined_call_operand.vmem [shape: f32[256,128], index: 3, kind: output, shape index: {}, may-alias: {0,3}]
  %s4 = sld [smem:[#allocation0]]
  $region22: #{graph_iso_bn.3} parent=0
    _
  %s6 = ssub.s32 1, %s4
  %s7 = scalar_select 0, %s6, %s4
  // Predicated region
  $region2: #{graph_iso_bn.3} parent=0 // pred_check
    _
  $region3: #{graph_iso_bn.3} parent=0 // pred_check_branch
    %9 = sbr.rel (0) target = $region5
  $region4: #{graph_iso_bn.3} parent=0 // pred_region
    _
  $region5: #{graph_iso_bn.3} parent=0 // pred_fallthru
    _
  // Predicated region
  $region6: #{graph_iso_bn.3} parent=0 // pred_check
    _
  $region7: #{graph_iso_bn.3} parent=0 // pred_check_branch
    %11 = sbr.rel (0) target = $region9
  $region8: #{graph_iso_bn.3} parent=0 // pred_region
    _
  $region9: #{graph_iso_bn.3} parent=0 // pred_fallthru
    _
  // Predicated region
  $region10: #{graph_iso_bn.3} parent=0 // pred_check
    _
  $region11: #{graph_iso_bn.3} parent=0 // pred_check_branch
    %13 = sbr.rel (0) target = $region13
  $region12: #{graph_iso_bn.3} parent=0 // pred_region
    _
  $region13: #{graph_iso_bn.3} parent=0 // pred_fallthru
    _
  %v14 = vld [vmem:[%s0] sm:$0xff]
  %v15 = vld [vmem:[%s0 + $0x8] sm:$0xff]
  %v16 = vld [vmem:[%s0 + $0x10] sm:$0xff]
  %v17 = vld [vmem:[%s0 + $0x18] sm:$0xff]
  %v18 = vld [vmem:[%s0 + $0x20] sm:$0xff]
  %v19 = vld [vmem:[%s0 + $0x28] sm:$0xff]
  %v20 = vld [vmem:[%s0 + $0x30] sm:$0xff]
  %v21 = vld [vmem:[%s0 + $0x38] sm:$0xff]
  %v22 = vld [vmem:[%s0 + $0x40] sm:$0xff]
  %v23 = vld [vmem:[%s0 + $0x48] sm:$0xff]
  %v24 = vld [vmem:[%s0 + $0x50] sm:$0xff]
  %v25 = vld [vmem:[%s0 + $0x58] sm:$0xff]
  %v26 = vld [vmem:[%s0 + $0x60] sm:$0xff]
  %v27 = vld [vmem:[%s0 + $0x68] sm:$0xff]
  %v28 = vld [vmem:[%s0 + $0x70] sm:$0xff]
  %v29 = vld [vmem:[%s0 + $0x78] sm:$0xff]
  %v30 = vld [vmem:[%s0 + $0x80] sm:$0xff]
  %v31 = vld [vmem:[%s0 + $0x88] sm:$0xff]
  %v32 = vld [vmem:[%s0 + $0x90] sm:$0xff]
  %v33 = vld [vmem:[%s0 + $0x98] sm:$0xff]
  %v34 = vld [vmem:[%s0 + $0xa0] sm:$0xff]
  %v35 = vld [vmem:[%s0 + $0xa8] sm:$0xff]
  %v36 = vld [vmem:[%s0 + $0xb0] sm:$0xff]
  %v37 = vld [vmem:[%s0 + $0xb8] sm:$0xff]
  %v38 = vld [vmem:[%s0 + $0xc0] sm:$0xff]
  %v39 = vld [vmem:[%s0 + $0xc8] sm:$0xff]
  %v40 = vld [vmem:[%s0 + $0xd0] sm:$0xff]
  %v41 = vld [vmem:[%s0 + $0xd8] sm:$0xff]
  %v42 = vld [vmem:[%s0 + $0xe0] sm:$0xff]
  %v43 = vld [vmem:[%s0 + $0xe8] sm:$0xff]
  %v44 = vld [vmem:[%s0 + $0xf0] sm:$0xff]
  %v45 = vld [vmem:[%s0 + $0xf8] sm:$0xff]
  %v46 = vld [vmem:[%s1] sm:$0x1]
  %v48 = vlaneseq
  %v49 = vshrl.u32 %v48, 7
  %v50 = vsub.s32 0, %v49
  %v51 = vrot.slane %v46, %v50
  %v53 = vmul.f32 %v14, %v51
  %v54 = vmul.f32 %v15, %v51
  %v55 = vmul.f32 %v16, %v51
  %v56 = vmul.f32 %v17, %v51
  %v57 = vmul.f32 %v18, %v51
  %v58 = vmul.f32 %v19, %v51
  %v59 = vmul.f32 %v20, %v51
  %v60 = vmul.f32 %v21, %v51
  %v61 = vmul.f32 %v22, %v51
  %v62 = vmul.f32 %v23, %v51
  %v63 = vmul.f32 %v24, %v51
  %v64 = vmul.f32 %v25, %v51
  %v65 = vmul.f32 %v26, %v51
  %v66 = vmul.f32 %v27, %v51
  %v67 = vmul.f32 %v28, %v51
  %v68 = vmul.f32 %v29, %v51
  %v69 = vmul.f32 %v30, %v51
  %v70 = vmul.f32 %v31, %v51
  %v71 = vmul.f32 %v32, %v51
  %v72 = vmul.f32 %v33, %v51
  %v73 = vmul.f32 %v34, %v51
  %v74 = vmul.f32 %v35, %v51
  %v75 = vmul.f32 %v36, %v51
  %v76 = vmul.f32 %v37, %v51
  %v77 = vmul.f32 %v38, %v51
  %v78 = vmul.f32 %v39, %v51
  %v79 = vmul.f32 %v40, %v51
  %v80 = vmul.f32 %v41, %v51
  %v81 = vmul.f32 %v42, %v51
  %v82 = vmul.f32 %v43, %v51
  %v83 = vmul.f32 %v44, %v51
  %v84 = vmul.f32 %v45, %v51
  %v85 = vld [vmem:[%s2] sm:$0x1]
  %v87 = vlaneseq
  %v88 = vshrl.u32 %v87, 7
  %v89 = vsub.s32 0, %v88
  %v90 = vrot.slane %v85, %v89
  %v92 = vadd.f32 %v53, %v90
  %v93 = vadd.f32 %v54, %v90
  %v94 = vadd.f32 %v55, %v90
  %v95 = vadd.f32 %v56, %v90
  %v96 = vadd.f32 %v57, %v90
  %v97 = vadd.f32 %v58, %v90
  %v98 = vadd.f32 %v59, %v90
  %v99 = vadd.f32 %v60, %v90
  %v100 = vadd.f32 %v61, %v90
  %v101 = vadd.f32 %v62, %v90
  %v102 = vadd.f32 %v63, %v90
  %v103 = vadd.f32 %v64, %v90
  %v104 = vadd.f32 %v65, %v90
  %v105 = vadd.f32 %v66, %v90
  %v106 = vadd.f32 %v67, %v90
  %v107 = vadd.f32 %v68, %v90
  %v108 = vadd.f32 %v69, %v90
  %v109 = vadd.f32 %v70, %v90
  %v110 = vadd.f32 %v71, %v90
  %v111 = vadd.f32 %v72, %v90
  %v112 = vadd.f32 %v73, %v90
  %v113 = vadd.f32 %v74, %v90
  %v114 = vadd.f32 %v75, %v90
  %v115 = vadd.f32 %v76, %v90
  %v116 = vadd.f32 %v77, %v90
  %v117 = vadd.f32 %v78, %v90
  %v118 = vadd.f32 %v79, %v90
  %v119 = vadd.f32 %v80, %v90
  %v120 = vadd.f32 %v81, %v90
  %v121 = vadd.f32 %v82, %v90
  %v122 = vadd.f32 %v83, %v90
  %v123 = vadd.f32 %v84, %v90
  %124 = vst [vmem:[%s3] sm:$0xff] %v92
  %125 = vst [vmem:[%s3 + $0x8] sm:$0xff] %v93
  %126 = vst [vmem:[%s3 + $0x10] sm:$0xff] %v94
  %127 = vst [vmem:[%s3 + $0x18] sm:$0xff] %v95
  %128 = vst [vmem:[%s3 + $0x20] sm:$0xff] %v96
  %129 = vst [vmem:[%s3 + $0x28] sm:$0xff] %v97
  %130 = vst [vmem:[%s3 + $0x30] sm:$0xff] %v98
  %131 = vst [vmem:[%s3 + $0x38] sm:$0xff] %v99
  %132 = vst [vmem:[%s3 + $0x40] sm:$0xff] %v100
  %133 = vst [vmem:[%s3 + $0x48] sm:$0xff] %v101
  %134 = vst [vmem:[%s3 + $0x50] sm:$0xff] %v102
  %135 = vst [vmem:[%s3 + $0x58] sm:$0xff] %v103
  %136 = vst [vmem:[%s3 + $0x60] sm:$0xff] %v104
  %137 = vst [vmem:[%s3 + $0x68] sm:$0xff] %v105
  %138 = vst [vmem:[%s3 + $0x70] sm:$0xff] %v106
  %139 = vst [vmem:[%s3 + $0x78] sm:$0xff] %v107
  %140 = vst [vmem:[%s3 + $0x80] sm:$0xff] %v108
  %141 = vst [vmem:[%s3 + $0x88] sm:$0xff] %v109
  %142 = vst [vmem:[%s3 + $0x90] sm:$0xff] %v110
  %143 = vst [vmem:[%s3 + $0x98] sm:$0xff] %v111
  %144 = vst [vmem:[%s3 + $0xa0] sm:$0xff] %v112
  %145 = vst [vmem:[%s3 + $0xa8] sm:$0xff] %v113
  %146 = vst [vmem:[%s3 + $0xb0] sm:$0xff] %v114
  %147 = vst [vmem:[%s3 + $0xb8] sm:$0xff] %v115
  %148 = vst [vmem:[%s3 + $0xc0] sm:$0xff] %v116
  %149 = vst [vmem:[%s3 + $0xc8] sm:$0xff] %v117
  %150 = vst [vmem:[%s3 + $0xd0] sm:$0xff] %v118
  %151 = vst [vmem:[%s3 + $0xd8] sm:$0xff] %v119
  %152 = vst [vmem:[%s3 + $0xe0] sm:$0xff] %v120
  %153 = vst [vmem:[%s3 + $0xe8] sm:$0xff] %v121
  %154 = vst [vmem:[%s3 + $0xf0] sm:$0xff] %v122
  %155 = vst [vmem:[%s3 + $0xf8] sm:$0xff] %v123
  // Predicated region
  $region14: #{graph_iso_bn.3} parent=0 // pred_check
    _
  $region15: #{graph_iso_bn.3} parent=0 // pred_check_branch
    %157 = sbr.rel (0) target = $region17
  $region16: #{graph_iso_bn.3} parent=0 // pred_region
    _
  $region17: #{graph_iso_bn.3} parent=0 // pred_fallthru
    _
  // Predicated region
  $region18: #{graph_iso_bn.3} parent=0 // pred_check
    _
  $region19: #{graph_iso_bn.3} parent=0 // pred_check_branch
    %159 = sbr.rel (0) target = $region21
  $region20: #{graph_iso_bn.3} parent=0 // pred_region
    _
  $region21: #{graph_iso_bn.3} parent=0 // pred_fallthru
    _

// kernel: graph_iso_bn.2
$region0: #{graph_iso_bn.2}
  #allocation0 [shape = 'u32[]', space=smem, size = 0x4, offset = 0x4, fixed_abs, tag = 'smem constant byte address 0x4 - core index']
  #allocation1 [shape = 'u32[144,128]{1,0:T(1,128)}', space=vmem, size = 0x12000, scoped, tag = 'internal scratch']
  %s0 = inlined_call_operand.vmem [shape: bf16[256,256], index: 0, kind: input, shape index: {}]
  %s1 = inlined_call_operand.vmem [shape: bf16[256,128], index: 1, kind: input, shape index: {}]
  %s2 = inlined_call_operand.vmem [shape: bf16[256,128], index: 2, kind: input, shape index: {}]
  %s3 = inlined_call_operand.vmem [shape: f32[128,128], index: 3, kind: input, shape index: {}]
  %s4 = inlined_call_operand.vmem [shape: f32[1,128], index: 4, kind: input, shape index: {}]
  %s5 = inlined_call_operand.vmem [shape: f32[128,128], index: 5, kind: input, shape index: {}]
  %s6 = inlined_call_operand.vmem [shape: f32[1,128], index: 6, kind: input, shape index: {}]
  %s7 = inlined_call_operand.vmem [shape: f32[256,128], index: 7, kind: output, shape index: {0}]
  %s8 = inlined_call_operand.vmem [shape: f32[1,1,128], index: 8, kind: output, shape index: {1}]
  %s9 = inlined_call_operand.vmem [shape: f32[1,1,128], index: 9, kind: output, shape index: {2}]
  %10 = xla_tuple %s7, %s8, %s9
  %s11 = sld [smem:[#allocation0]]
  $region54: #{graph_iso_bn.2} parent=0
    _
  %s13 = ssub.s32 1, %s11
  %s14 = scalar_select 0, %s13, %s11
  // Predicated region
  $region2: #{graph_iso_bn.2} parent=0 // pred_check
    _
  $region3: #{graph_iso_bn.2} parent=0 // pred_check_branch
    %16 = sbr.rel (0) target = $region5
  $region4: #{graph_iso_bn.2} parent=0 // pred_region
    _
  $region5: #{graph_iso_bn.2} parent=0 // pred_fallthru
    _
  // Predicated region
  $region6: #{graph_iso_bn.2} parent=0 // pred_check
    _
  $region7: #{graph_iso_bn.2} parent=0 // pred_check_branch
    %18 = sbr.rel (0) target = $region9
  $region8: #{graph_iso_bn.2} parent=0 // pred_region
    _
  $region9: #{graph_iso_bn.2} parent=0 // pred_fallthru
    _
  // Predicated region
  $region10: #{graph_iso_bn.2} parent=0 // pred_check
    _
  $region11: #{graph_iso_bn.2} parent=0 // pred_check_branch
    %20 = sbr.rel (0) target = $region13
  $region12: #{graph_iso_bn.2} parent=0 // pred_region
    _
  $region13: #{graph_iso_bn.2} parent=0 // pred_fallthru
    _
  // Predicated region
  $region14: #{graph_iso_bn.2} parent=0 // pred_check
    _
  $region15: #{graph_iso_bn.2} parent=0 // pred_check_branch
    %22 = sbr.rel (0) target = $region17
  $region16: #{graph_iso_bn.2} parent=0 // pred_region
    _
  $region17: #{graph_iso_bn.2} parent=0 // pred_fallthru
    _
  // Predicated region
  $region18: #{graph_iso_bn.2} parent=0 // pred_check
    _
  $region19: #{graph_iso_bn.2} parent=0 // pred_check_branch
    %24 = sbr.rel (0) target = $region21
  $region20: #{graph_iso_bn.2} parent=0 // pred_region
    _
  $region21: #{graph_iso_bn.2} parent=0 // pred_fallthru
    _
  // Predicated region
  $region22: #{graph_iso_bn.2} parent=0 // pred_check
    _
  $region23: #{graph_iso_bn.2} parent=0 // pred_check_branch
    %26 = sbr.rel (0) target = $region25
  $region24: #{graph_iso_bn.2} parent=0 // pred_region
    _
  $region25: #{graph_iso_bn.2} parent=0 // pred_fallthru
    _
  // Predicated region
  $region26: #{graph_iso_bn.2} parent=0 // pred_check
    _
  $region27: #{graph_iso_bn.2} parent=0 // pred_check_branch
    %28 = sbr.rel (0) target = $region29
  $region28: #{graph_iso_bn.2} parent=0 // pred_region
    _
  $region29: #{graph_iso_bn.2} parent=0 // pred_fallthru
    _
  %v30 = vld [vmem:[%s0] sm:$0xff]
  %v31 = vld [vmem:[%s0 + $0x8] sm:$0xff]
  %v32 = vld [vmem:[%s0 + $0x10] sm:$0xff]
  %v33 = vld [vmem:[%s0 + $0x18] sm:$0xff]
  %v34 = vld [vmem:[%s0 + $0x20] sm:$0xff]
  %v35 = vld [vmem:[%s0 + $0x28] sm:$0xff]
  %v36 = vld [vmem:[%s0 + $0x30] sm:$0xff]
  %v37 = vld [vmem:[%s0 + $0x38] sm:$0xff]
  %v38 = vld [vmem:[%s0 + $0x40] sm:$0xff]
  %v39 = vld [vmem:[%s0 + $0x48] sm:$0xff]
  %v40 = vld [vmem:[%s0 + $0x50] sm:$0xff]
  %v41 = vld [vmem:[%s0 + $0x58] sm:$0xff]
  %v42 = vld [vmem:[%s0 + $0x60] sm:$0xff]
  %v43 = vld [vmem:[%s0 + $0x68] sm:$0xff]
  %v44 = vld [vmem:[%s0 + $0x70] sm:$0xff]
  %v45 = vld [vmem:[%s0 + $0x78] sm:$0xff]
  %v46 = vld [vmem:[%s0 + $0x80] sm:$0xff]
  %v47 = vld [vmem:[%s0 + $0x88] sm:$0xff]
  %v48 = vld [vmem:[%s0 + $0x90] sm:$0xff]
  %v49 = vld [vmem:[%s0 + $0x98] sm:$0xff]
  %v50 = vld [vmem:[%s0 + $0xa0] sm:$0xff]
  %v51 = vld [vmem:[%s0 + $0xa8] sm:$0xff]
  %v52 = vld [vmem:[%s0 + $0xb0] sm:$0xff]
  %v53 = vld [vmem:[%s0 + $0xb8] sm:$0xff]
  %v54 = vld [vmem:[%s0 + $0xc0] sm:$0xff]
  %v55 = vld [vmem:[%s0 + $0xc8] sm:$0xff]
  %v56 = vld [vmem:[%s0 + $0xd0] sm:$0xff]
  %v57 = vld [vmem:[%s0 + $0xd8] sm:$0xff]
  %v58 = vld [vmem:[%s0 + $0xe0] sm:$0xff]
  %v59 = vld [vmem:[%s0 + $0xe8] sm:$0xff]
  %v60 = vld [vmem:[%s0 + $0xf0] sm:$0xff]
  %v61 = vld [vmem:[%s0 + $0xf8] sm:$0xff]
  %v62 = vld [vmem:[%s1] sm:$0xf]
  %v63 = vld [vmem:[%s1 + $0x4] sm:$0xf]
  %v64 = vld [vmem:[%s1 + $0x8] sm:$0xf]
  %v65 = vld [vmem:[%s1 + $0xc] sm:$0xf]
  %v66 = vld [vmem:[%s1 + $0x10] sm:$0xf]
  %v67 = vld [vmem:[%s1 + $0x14] sm:$0xf]
  %v68 = vld [vmem:[%s1 + $0x18] sm:$0xf]
  %v69 = vld [vmem:[%s1 + $0x1c] sm:$0xf]
  %v70 = vld [vmem:[%s1 + $0x20] sm:$0xf]
  %v71 = vld [vmem:[%s1 + $0x24] sm:$0xf]
  %v72 = vld [vmem:[%s1 + $0x28] sm:$0xf]
  %v73 = vld [vmem:[%s1 + $0x2c] sm:$0xf]
  %v74 = vld [vmem:[%s1 + $0x30] sm:$0xf]
  %v75 = vld [vmem:[%s1 + $0x34] sm:$0xf]
  %v76 = vld [vmem:[%s1 + $0x38] sm:$0xf]
  %v77 = vld [vmem:[%s1 + $0x3c] sm:$0xf]
  %v78 = vld [vmem:[%s1 + $0x40] sm:$0xf]
  %v79 = vld [vmem:[%s1 + $0x44] sm:$0xf]
  %v80 = vld [vmem:[%s1 + $0x48] sm:$0xf]
  %v81 = vld [vmem:[%s1 + $0x4c] sm:$0xf]
  %v82 = vld [vmem:[%s1 + $0x50] sm:$0xf]
  %v83 = vld [vmem:[%s1 + $0x54] sm:$0xf]
  %v84 = vld [vmem:[%s1 + $0x58] sm:$0xf]
  %v85 = vld [vmem:[%s1 + $0x5c] sm:$0xf]
  %v86 = vld [vmem:[%s1 + $0x60] sm:$0xf]
  %v87 = vld [vmem:[%s1 + $0x64] sm:$0xf]
  %v88 = vld [vmem:[%s1 + $0x68] sm:$0xf]
  %v89 = vld [vmem:[%s1 + $0x6c] sm:$0xf]
  %v90 = vld [vmem:[%s1 + $0x70] sm:$0xf]
  %v91 = vld [vmem:[%s1 + $0x74] sm:$0xf]
  %v92 = vld [vmem:[%s1 + $0x78] sm:$0xf]
  %v93 = vld [vmem:[%s1 + $0x7c] sm:$0xf]
  %v94 = vld [vmem:[%s2] sm:$0xf]
  %v95 = vld [vmem:[%s2 + $0x4] sm:$0xf]
  %v96 = vld [vmem:[%s2 + $0x8] sm:$0xf]
  %v97 = vld [vmem:[%s2 + $0xc] sm:$0xf]
  %v98 = vld [vmem:[%s2 + $0x10] sm:$0xf]
  %v99 = vld [vmem:[%s2 + $0x14] sm:$0xf]
  %v100 = vld [vmem:[%s2 + $0x18] sm:$0xf]
  %v101 = vld [vmem:[%s2 + $0x1c] sm:$0xf]
  %v102 = vld [vmem:[%s2 + $0x20] sm:$0xf]
  %v103 = vld [vmem:[%s2 + $0x24] sm:$0xf]
  %v104 = vld [vmem:[%s2 + $0x28] sm:$0xf]
  %v105 = vld [vmem:[%s2 + $0x2c] sm:$0xf]
  %v106 = vld [vmem:[%s2 + $0x30] sm:$0xf]
  %v107 = vld [vmem:[%s2 + $0x34] sm:$0xf]
  %v108 = vld [vmem:[%s2 + $0x38] sm:$0xf]
  %v109 = vld [vmem:[%s2 + $0x3c] sm:$0xf]
  %v110 = vld [vmem:[%s2 + $0x40] sm:$0xf]
  %v111 = vld [vmem:[%s2 + $0x44] sm:$0xf]
  %v112 = vld [vmem:[%s2 + $0x48] sm:$0xf]
  %v113 = vld [vmem:[%s2 + $0x4c] sm:$0xf]
  %v114 = vld [vmem:[%s2 + $0x50] sm:$0xf]
  %v115 = vld [vmem:[%s2 + $0x54] sm:$0xf]
  %v116 = vld [vmem:[%s2 + $0x58] sm:$0xf]
  %v117 = vld [vmem:[%s2 + $0x5c] sm:$0xf]
  %v118 = vld [vmem:[%s2 + $0x60] sm:$0xf]
  %v119 = vld [vmem:[%s2 + $0x64] sm:$0xf]
  %v120 = vld [vmem:[%s2 + $0x68] sm:$0xf]
  %v121 = vld [vmem:[%s2 + $0x6c] sm:$0xf]
  %v122 = vld [vmem:[%s2 + $0x70] sm:$0xf]
  %v123 = vld [vmem:[%s2 + $0x74] sm:$0xf]
  %v124 = vld [vmem:[%s2 + $0x78] sm:$0xf]
  %v125 = vld [vmem:[%s2 + $0x7c] sm:$0xf]
  %v158 = vunpack.c.l.b16 %v30
  %v159 = vunpack.c.h.b16 %v30
  %v160 = vunpack.c.l.b16 %v31
  %v161 = vunpack.c.h.b16 %v31
  %v162 = vunpack.c.l.b16 %v32
  %v163 = vunpack.c.h.b16 %v32
  %v164 = vunpack.c.l.b16 %v33
  %v165 = vunpack.c.h.b16 %v33
  %v166 = vunpack.c.l.b16 %v34
  %v167 = vunpack.c.h.b16 %v34
  %v168 = vunpack.c.l.b16 %v35
  %v169 = vunpack.c.h.b16 %v35
  %v170 = vunpack.c.l.b16 %v36
  %v171 = vunpack.c.h.b16 %v36
  %v172 = vunpack.c.l.b16 %v37
  %v173 = vunpack.c.h.b16 %v37
  %v174 = vunpack.c.l.b16 %v38
  %v175 = vunpack.c.h.b16 %v38
  %v176 = vunpack.c.l.b16 %v39
  %v177 = vunpack.c.h.b16 %v39
  %v178 = vunpack.c.l.b16 %v40
  %v179 = vunpack.c.h.b16 %v40
  %v180 = vunpack.c.l.b16 %v41
  %v181 = vunpack.c.h.b16 %v41
  %v182 = vunpack.c.l.b16 %v42
  %v183 = vunpack.c.h.b16 %v42
  %v184 = vunpack.c.l.b16 %v43
  %v185 = vunpack.c.h.b16 %v43
  %v186 = vunpack.c.l.b16 %v44
  %v187 = vunpack.c.h.b16 %v44
  %v188 = vunpack.c.l.b16 %v45
  %v189 = vunpack.c.h.b16 %v45
  %v190 = vunpack.c.l.b16 %v46
  %v191 = vunpack.c.h.b16 %v46
  %v192 = vunpack.c.l.b16 %v47
  %v193 = vunpack.c.h.b16 %v47
  %v194 = vunpack.c.l.b16 %v48
  %v195 = vunpack.c.h.b16 %v48
  %v196 = vunpack.c.l.b16 %v49
  %v197 = vunpack.c.h.b16 %v49
  %v198 = vunpack.c.l.b16 %v50
  %v199 = vunpack.c.h.b16 %v50
  %v200 = vunpack.c.l.b16 %v51
  %v201 = vunpack.c.h.b16 %v51
  %v202 = vunpack.c.l.b16 %v52
  %v203 = vunpack.c.h.b16 %v52
  %v204 = vunpack.c.l.b16 %v53
  %v205 = vunpack.c.h.b16 %v53
  %v206 = vunpack.c.l.b16 %v54
  %v207 = vunpack.c.h.b16 %v54
  %v208 = vunpack.c.l.b16 %v55
  %v209 = vunpack.c.h.b16 %v55
  %v210 = vunpack.c.l.b16 %v56
  %v211 = vunpack.c.h.b16 %v56
  %v212 = vunpack.c.l.b16 %v57
  %v213 = vunpack.c.h.b16 %v57
  %v214 = vunpack.c.l.b16 %v58
  %v215 = vunpack.c.h.b16 %v58
  %v216 = vunpack.c.l.b16 %v59
  %v217 = vunpack.c.h.b16 %v59
  %v218 = vunpack.c.l.b16 %v60
  %v219 = vunpack.c.h.b16 %v60
  %v220 = vunpack.c.l.b16 %v61
  %v221 = vunpack.c.h.b16 %v61
  %v222 = vpack.c.b16 %v160, %v158
  %v223 = vpack.c.b16 %v161, %v159
  %v224 = vpack.c.b16 %v164, %v162
  %v225 = vpack.c.b16 %v165, %v163
  %v226 = vpack.c.b16 %v168, %v166
  %v227 = vpack.c.b16 %v169, %v167
  %v228 = vpack.c.b16 %v172, %v170
  %v229 = vpack.c.b16 %v173, %v171
  %v230 = vpack.c.b16 %v176, %v174
  %v231 = vpack.c.b16 %v177, %v175
  %v232 = vpack.c.b16 %v180, %v178
  %v233 = vpack.c.b16 %v181, %v179
  %v234 = vpack.c.b16 %v184, %v182
  %v235 = vpack.c.b16 %v185, %v183
  %v236 = vpack.c.b16 %v188, %v186
  %v237 = vpack.c.b16 %v189, %v187
  %v238 = vpack.c.b16 %v192, %v190
  %v239 = vpack.c.b16 %v193, %v191
  %v240 = vpack.c.b16 %v196, %v194
  %v241 = vpack.c.b16 %v197, %v195
  %v242 = vpack.c.b16 %v200, %v198
  %v243 = vpack.c.b16 %v201, %v199
  %v244 = vpack.c.b16 %v204, %v202
  %v245 = vpack.c.b16 %v205, %v203
  %v246 = vpack.c.b16 %v208, %v206
  %v247 = vpack.c.b16 %v209, %v207
  %v248 = vpack.c.b16 %v212, %v210
  %v249 = vpack.c.b16 %v213, %v211
  %v250 = vpack.c.b16 %v216, %v214
  %v251 = vpack.c.b16 %v217, %v215
  %v252 = vpack.c.b16 %v220, %v218
  %v253 = vpack.c.b16 %v221, %v219
  %v318 = vunpack.c.l.b16 %v94
  %v319 = vunpack.c.l.b16 %v95
  %v320 = vunpack.c.l.b16 %v96
  %v321 = vunpack.c.l.b16 %v97
  %v322 = vunpack.c.l.b16 %v98
  %v323 = vunpack.c.l.b16 %v99
  %v324 = vunpack.c.l.b16 %v100
  %v325 = vunpack.c.l.b16 %v101
  %v326 = vunpack.c.l.b16 %v102
  %v327 = vunpack.c.l.b16 %v103
  %v328 = vunpack.c.l.b16 %v104
  %v329 = vunpack.c.l.b16 %v105
  %v330 = vunpack.c.l.b16 %v106
  %v331 = vunpack.c.l.b16 %v107
  %v332 = vunpack.c.l.b16 %v108
  %v333 = vunpack.c.l.b16 %v109
  %v334 = vunpack.c.l.b16 %v110
  %v335 = vunpack.c.l.b16 %v111
  %v336 = vunpack.c.l.b16 %v112
  %v337 = vunpack.c.l.b16 %v113
  %v338 = vunpack.c.l.b16 %v114
  %v339 = vunpack.c.l.b16 %v115
  %v340 = vunpack.c.l.b16 %v116
  %v341 = vunpack.c.l.b16 %v117
  %v342 = vunpack.c.l.b16 %v118
  %v343 = vunpack.c.l.b16 %v119
  %v344 = vunpack.c.l.b16 %v120
  %v345 = vunpack.c.l.b16 %v121
  %v346 = vunpack.c.l.b16 %v122
  %v347 = vunpack.c.l.b16 %v123
  %v348 = vunpack.c.l.b16 %v124
  %v349 = vunpack.c.l.b16 %v125
  %v350 = vpack.c.b16 %v319, %v318
  %v351 = vpack.c.b16 %v321, %v320
  %v352 = vpack.c.b16 %v323, %v322
  %v353 = vpack.c.b16 %v325, %v324
  %v354 = vpack.c.b16 %v327, %v326
  %v355 = vpack.c.b16 %v329, %v328
  %v356 = vpack.c.b16 %v331, %v330
  %v357 = vpack.c.b16 %v333, %v332
  %v358 = vpack.c.b16 %v335, %v334
  %v359 = vpack.c.b16 %v337, %v336
  %v360 = vpack.c.b16 %v339, %v338
  %v361 = vpack.c.b16 %v341, %v340
  %v362 = vpack.c.b16 %v343, %v342
  %v363 = vpack.c.b16 %v345, %v344
  %v364 = vpack.c.b16 %v347, %v346
  %v365 = vpack.c.b16 %v349, %v348
  %382 = vmatprep.subr.bf16.mxu0 0
  %383 = vmatpush1.bf16.msra.mxu0 %v350
  %384 = vmatprep.subr.bf16.mxu0 0
  %385 = vmatpush1.bf16.msra.mxu0 %v351
  %386 = vmatprep.subr.bf16.mxu0 0
  %387 = vmatpush1.bf16.msra.mxu0 %v352
  %388 = vmatprep.subr.bf16.mxu0 0
  %389 = vmatpush1.bf16.msra.mxu0 %v353
  %390 = vmatprep.subr.bf16.mxu0 0
  %391 = vmatpush1.bf16.msra.mxu0 %v354
  %392 = vmatprep.subr.bf16.mxu0 0
  %393 = vmatpush1.bf16.msra.mxu0 %v355
  %394 = vmatprep.subr.bf16.mxu0 0
  %395 = vmatpush1.bf16.msra.mxu0 %v356
  %396 = vmatprep.subr.bf16.mxu0 0
  %397 = vmatpush1.bf16.msra.mxu0 %v357
  %398 = vmatprep.subr.bf16.mxu0 0
  %399 = vmatpush1.bf16.msra.mxu0 %v358
  %400 = vmatprep.subr.bf16.mxu0 0
  %401 = vmatpush1.bf16.msra.mxu0 %v359
  %402 = vmatprep.subr.bf16.mxu0 0
  %403 = vmatpush1.bf16.msra.mxu0 %v360
  %404 = vmatprep.subr.bf16.mxu0 0
  %405 = vmatpush1.bf16.msra.mxu0 %v361
  %406 = vmatprep.subr.bf16.mxu0 0
  %407 = vmatpush1.bf16.msra.mxu0 %v362
  %408 = vmatprep.subr.bf16.mxu0 0
  %409 = vmatpush1.bf16.msra.mxu0 %v363
  %410 = vmatprep.subr.bf16.mxu0 0
  %411 = vmatpush1.bf16.msra.mxu0 %v364
  %412 = vmatprep.subr.bf16.mxu0 0
  %413 = vmatpush1.bf16.msra.mxu0 %v365
  %414 = vmatprep.mubr.bf16.mxu0 %v223
  %415 = vmatmul.mubr.bf16.gmra.mrb[0].mxu0 %v222
  %v416 = vpop.f32.mrb[0].mxu0
  %v417 = vadd.f32 0.0, %v416
  %v418 = vpop.f32.mrb[0].mxu0
  %v419 = vpop.f32.mrb[0].mxu0
  %v420 = vadd.f32 0.0, %v419
  %v421 = vpop.f32.mrb[0].mxu0
  %422 = vmatprep.mubr.bf16.mxu0 %v225
  %423 = vmatmul.mubr.bf16.gmra.mrb[0].mxu0 %v224
  %v424 = vpop.f32.mrb[0].mxu0
  %v425 = vadd.f32 0.0, %v424
  %v426 = vpop.f32.mrb[0].mxu0
  %v427 = vpop.f32.mrb[0].mxu0
  %v428 = vadd.f32 0.0, %v427
  %v429 = vpop.f32.mrb[0].mxu0
  %430 = vmatprep.mubr.bf16.mxu0 %v227
  %431 = vmatmul.mubr.bf16.gmra.mrb[0].mxu0 %v226
  %v432 = vpop.f32.mrb[0].mxu0
  %v433 = vadd.f32 0.0, %v432
  %v434 = vpop.f32.mrb[0].mxu0
  %v435 = vpop.f32.mrb[0].mxu0
  %v436 = vadd.f32 0.0, %v435
  %v437 = vpop.f32.mrb[0].mxu0
  %438 = vmatprep.mubr.bf16.mxu0 %v229
  %439 = vmatmul.mubr.bf16.gmra.mrb[0].mxu0 %v228
  %v440 = vpop.f32.mrb[0].mxu0
  %v441 = vadd.f32 0.0, %v440
  %v442 = vpop.f32.mrb[0].mxu0
  %v443 = vpop.f32.mrb[0].mxu0
  %v444 = vadd.f32 0.0, %v443
  %v445 = vpop.f32.mrb[0].mxu0
  %446 = vmatprep.mubr.bf16.mxu0 %v231
  %447 = vmatmul.mubr.bf16.gmra.mrb[0].mxu0 %v230
  %v448 = vpop.f32.mrb[0].mxu0
  %v449 = vadd.f32 0.0, %v448
  %v450 = vpop.f32.mrb[0].mxu0
  %v451 = vpop.f32.mrb[0].mxu0
  %v452 = vadd.f32 0.0, %v451
  %v453 = vpop.f32.mrb[0].mxu0
  %454 = vmatprep.mubr.bf16.mxu0 %v233
  %455 = vmatmul.mubr.bf16.gmra.mrb[0].mxu0 %v232
  %v456 = vpop.f32.mrb[0].mxu0
  %v457 = vadd.f32 0.0, %v456
  %v458 = vpop.f32.mrb[0].mxu0
  %v459 = vpop.f32.mrb[0].mxu0
  %v460 = vadd.f32 0.0, %v459
  %v461 = vpop.f32.mrb[0].mxu0
  %462 = vmatprep.mubr.bf16.mxu0 %v235
  %463 = vmatmul.mubr.bf16.gmra.mrb[0].mxu0 %v234
  %v464 = vpop.f32.mrb[0].mxu0
  %v465 = vadd.f32 0.0, %v464
  %v466 = vpop.f32.mrb[0].mxu0
  %v467 = vpop.f32.mrb[0].mxu0
  %v468 = vadd.f32 0.0, %v467
  %v469 = vpop.f32.mrb[0].mxu0
  %470 = vmatprep.mubr.bf16.mxu0 %v237
  %471 = vmatmul.mubr.bf16.gmra.mrb[0].mxu0 %v236
  %v472 = vpop.f32.mrb[0].mxu0
  %v473 = vadd.f32 0.0, %v472
  %v474 = vpop.f32.mrb[0].mxu0
  %v475 = vpop.f32.mrb[0].mxu0
  %v476 = vadd.f32 0.0, %v475
  %v477 = vpop.f32.mrb[0].mxu0
  %478 = vmatprep.mubr.bf16.mxu0 %v239
  %479 = vmatmul.mubr.bf16.gmra.mrb[0].mxu0 %v238
  %v480 = vpop.f32.mrb[0].mxu0
  %v481 = vadd.f32 0.0, %v480
  %v482 = vpop.f32.mrb[0].mxu0
  %v483 = vpop.f32.mrb[0].mxu0
  %v484 = vadd.f32 0.0, %v483
  %v485 = vpop.f32.mrb[0].mxu0
  %486 = vmatprep.mubr.bf16.mxu0 %v241
  %487 = vmatmul.mubr.bf16.gmra.mrb[0].mxu0 %v240
  %v488 = vpop.f32.mrb[0].mxu0
  %v489 = vadd.f32 0.0, %v488
  %v490 = vpop.f32.mrb[0].mxu0
  %v491 = vpop.f32.mrb[0].mxu0
  %v492 = vadd.f32 0.0, %v491
  %v493 = vpop.f32.mrb[0].mxu0
  %494 = vmatprep.mubr.bf16.mxu0 %v243
  %495 = vmatmul.mubr.bf16.gmra.mrb[0].mxu0 %v242
  %v496 = vpop.f32.mrb[0].mxu0
  %v497 = vadd.f32 0.0, %v496
  %v498 = vpop.f32.mrb[0].mxu0
  %v499 = vpop.f32.mrb[0].mxu0
  %v500 = vadd.f32 0.0, %v499
  %v501 = vpop.f32.mrb[0].mxu0
  %502 = vmatprep.mubr.bf16.mxu0 %v245
  %503 = vmatmul.mubr.bf16.gmra.mrb[0].mxu0 %v244
  %v504 = vpop.f32.mrb[0].mxu0
  %v505 = vadd.f32 0.0, %v504
  %v506 = vpop.f32.mrb[0].mxu0
  %v507 = vpop.f32.mrb[0].mxu0
  %v508 = vadd.f32 0.0, %v507
  %v509 = vpop.f32.mrb[0].mxu0
  %510 = vmatprep.mubr.bf16.mxu0 %v247
  %511 = vmatmul.mubr.bf16.gmra.mrb[0].mxu0 %v246
  %v512 = vpop.f32.mrb[0].mxu0
  %v513 = vadd.f32 0.0, %v512
  %v514 = vpop.f32.mrb[0].mxu0
  %v515 = vpop.f32.mrb[0].mxu0
  %v516 = vadd.f32 0.0, %v515
  %v517 = vpop.f32.mrb[0].mxu0
  %518 = vmatprep.mubr.bf16.mxu0 %v249
  %519 = vmatmul.mubr.bf16.gmra.mrb[0].mxu0 %v248
  %v520 = vpop.f32.mrb[0].mxu0
  %v521 = vadd.f32 0.0, %v520
  %v522 = vpop.f32.mrb[0].mxu0
  %v523 = vpop.f32.mrb[0].mxu0
  %v524 = vadd.f32 0.0, %v523
  %v525 = vpop.f32.mrb[0].mxu0
  %526 = vmatprep.mubr.bf16.mxu0 %v251
  %527 = vmatmul.mubr.bf16.gmra.mrb[0].mxu0 %v250
  %v528 = vpop.f32.mrb[0].mxu0
  %v529 = vadd.f32 0.0, %v528
  %v530 = vpop.f32.mrb[0].mxu0
  %v531 = vpop.f32.mrb[0].mxu0
  %v532 = vadd.f32 0.0, %v531
  %v533 = vpop.f32.mrb[0].mxu0
  %534 = vmatprep.mubr.bf16.mxu0 %v253
  %535 = vmatmul.mubr.bf16.gmra.mrb[0].mxu0 %v252
  %v536 = vpop.f32.mrb[0].mxu0
  %v537 = vadd.f32 0.0, %v536
  %v538 = vpop.f32.mrb[0].mxu0
  %v539 = vpop.f32.mrb[0].mxu0
  %v540 = vadd.f32 0.0, %v539
  %v541 = vpop.f32.mrb[0].mxu0
  %542 = vdwg.mxu0
  %v575 = vunpack.c.l.b16 %v62
  %v576 = vunpack.c.l.b16 %v63
  %v577 = vunpack.c.l.b16 %v64
  %v578 = vunpack.c.l.b16 %v65
  %v579 = vunpack.c.l.b16 %v66
  %v580 = vunpack.c.l.b16 %v67
  %v581 = vunpack.c.l.b16 %v68
  %v582 = vunpack.c.l.b16 %v69
  %v583 = vunpack.c.l.b16 %v70
  %v584 = vunpack.c.l.b16 %v71
  %v585 = vunpack.c.l.b16 %v72
  %v586 = vunpack.c.l.b16 %v73
  %v587 = vunpack.c.l.b16 %v74
  %v588 = vunpack.c.l.b16 %v75
  %v589 = vunpack.c.l.b16 %v76
  %v590 = vunpack.c.l.b16 %v77
  %v591 = vunpack.c.l.b16 %v78
  %v592 = vunpack.c.l.b16 %v79
  %v593 = vunpack.c.l.b16 %v80
  %v594 = vunpack.c.l.b16 %v81
  %v595 = vunpack.c.l.b16 %v82
  %v596 = vunpack.c.l.b16 %v83
  %v597 = vunpack.c.l.b16 %v84
  %v598 = vunpack.c.l.b16 %v85
  %v599 = vunpack.c.l.b16 %v86
  %v600 = vunpack.c.l.b16 %v87
  %v601 = vunpack.c.l.b16 %v88
  %v602 = vunpack.c.l.b16 %v89
  %v603 = vunpack.c.l.b16 %v90
  %v604 = vunpack.c.l.b16 %v91
  %v605 = vunpack.c.l.b16 %v92
  %v606 = vunpack.c.l.b16 %v93
  %v607 = vpack.c.b16 %v576, %v575
  %v608 = vpack.c.b16 %v578, %v577
  %v609 = vpack.c.b16 %v580, %v579
  %v610 = vpack.c.b16 %v582, %v581
  %v611 = vpack.c.b16 %v584, %v583
  %v612 = vpack.c.b16 %v586, %v585
  %v613 = vpack.c.b16 %v588, %v587
  %v614 = vpack.c.b16 %v590, %v589
  %v615 = vpack.c.b16 %v592, %v591
  %v616 = vpack.c.b16 %v594, %v593
  %v617 = vpack.c.b16 %v596, %v595
  %v618 = vpack.c.b16 %v598, %v597
  %v619 = vpack.c.b16 %v600, %v599
  %v620 = vpack.c.b16 %v602, %v601
  %v621 = vpack.c.b16 %v604, %v603
  %v622 = vpack.c.b16 %v606, %v605
  %639 = vmatprep.subr.bf16.mxu0 0
  %640 = vmatpush1.bf16.msra.mxu0 %v607
  %641 = vmatprep.subr.bf16.mxu0 0
  %642 = vmatpush1.bf16.msra.mxu0 %v608
  %643 = vmatprep.subr.bf16.mxu0 0
  %644 = vmatpush1.bf16.msra.mxu0 %v609
  %645 = vmatprep.subr.bf16.mxu0 0
  %646 = vmatpush1.bf16.msra.mxu0 %v610
  %647 = vmatprep.subr.bf16.mxu0 0
  %648 = vmatpush1.bf16.msra.mxu0 %v611
  %649 = vmatprep.subr.bf16.mxu0 0
  %650 = vmatpush1.bf16.msra.mxu0 %v612
  %651 = vmatprep.subr.bf16.mxu0 0
  %652 = vmatpush1.bf16.msra.mxu0 %v613
  %653 = vmatprep.subr.bf16.mxu0 0
  %654 = vmatpush1.bf16.msra.mxu0 %v614
  %655 = vmatprep.subr.bf16.mxu0 0
  %656 = vmatpush1.bf16.msra.mxu0 %v615
  %657 = vmatprep.subr.bf16.mxu0 0
  %658 = vmatpush1.bf16.msra.mxu0 %v616
  %659 = vmatprep.subr.bf16.mxu0 0
  %660 = vmatpush1.bf16.msra.mxu0 %v617
  %661 = vmatprep.subr.bf16.mxu0 0
  %662 = vmatpush1.bf16.msra.mxu0 %v618
  %663 = vmatprep.subr.bf16.mxu0 0
  %664 = vmatpush1.bf16.msra.mxu0 %v619
  %665 = vmatprep.subr.bf16.mxu0 0
  %666 = vmatpush1.bf16.msra.mxu0 %v620
  %667 = vmatprep.subr.bf16.mxu0 0
  %668 = vmatpush1.bf16.msra.mxu0 %v621
  %669 = vmatprep.subr.bf16.mxu0 0
  %670 = vmatpush1.bf16.msra.mxu0 %v622
  %671 = vmatprep.mubr.bf16.mxu0 %v223
  %672 = vmatmul.mubr.bf16.gmra.mrb[0].mxu0 %v222
  %v673 = vpop.f32.mrb[0].mxu0
  %v674 = vadd.f32 %v417, %v673
  %v675 = vpop.f32.mrb[0].mxu0
  %v676 = vpop.f32.mrb[0].mxu0
  %v677 = vadd.f32 %v420, %v676
  %v678 = vpop.f32.mrb[0].mxu0
  %679 = vmatprep.mubr.bf16.mxu0 %v225
  %680 = vmatmul.mubr.bf16.gmra.mrb[0].mxu0 %v224
  %v681 = vpop.f32.mrb[0].mxu0
  %v682 = vadd.f32 %v425, %v681
  %v683 = vpop.f32.mrb[0].mxu0
  %v684 = vpop.f32.mrb[0].mxu0
  %v685 = vadd.f32 %v428, %v684
  %v686 = vpop.f32.mrb[0].mxu0
  %687 = vmatprep.mubr.bf16.mxu0 %v227
  %688 = vmatmul.mubr.bf16.gmra.mrb[0].mxu0 %v226
  %v689 = vpop.f32.mrb[0].mxu0
  %v690 = vadd.f32 %v433, %v689
  %v691 = vpop.f32.mrb[0].mxu0
  %v692 = vpop.f32.mrb[0].mxu0
  %v693 = vadd.f32 %v436, %v692
  %v694 = vpop.f32.mrb[0].mxu0
  %695 = vmatprep.mubr.bf16.mxu0 %v229
  %696 = vmatmul.mubr.bf16.gmra.mrb[0].mxu0 %v228
  %v697 = vpop.f32.mrb[0].mxu0
  %v698 = vadd.f32 %v441, %v697
  %v699 = vpop.f32.mrb[0].mxu0
  %v700 = vpop.f32.mrb[0].mxu0
  %v701 = vadd.f32 %v444, %v700
  %v702 = vpop.f32.mrb[0].mxu0
  %703 = vmatprep.mubr.bf16.mxu0 %v231
  %704 = vmatmul.mubr.bf16.gmra.mrb[0].mxu0 %v230
  %v705 = vpop.f32.mrb[0].mxu0
  %v706 = vadd.f32 %v449, %v705
  %v707 = vpop.f32.mrb[0].mxu0
  %v708 = vpop.f32.mrb[0].mxu0
  %v709 = vadd.f32 %v452, %v708
  %v710 = vpop.f32.mrb[0].mxu0
  %711 = vmatprep.mubr.bf16.mxu0 %v233
  %712 = vmatmul.mubr.bf16.gmra.mrb[0].mxu0 %v232
  %v713 = vpop.f32.mrb[0].mxu0
  %v714 = vadd.f32 %v457, %v713
  %v715 = vpop.f32.mrb[0].mxu0
  %v716 = vpop.f32.mrb[0].mxu0
  %v717 = vadd.f32 %v460, %v716
  %v718 = vpop.f32.mrb[0].mxu0
  %719 = vmatprep.mubr.bf16.mxu0 %v235
  %720 = vmatmul.mubr.bf16.gmra.mrb[0].mxu0 %v234
  %v721 = vpop.f32.mrb[0].mxu0
  %v722 = vadd.f32 %v465, %v721
  %v723 = vpop.f32.mrb[0].mxu0
  %v724 = vpop.f32.mrb[0].mxu0
  %v725 = vadd.f32 %v468, %v724
  %v726 = vpop.f32.mrb[0].mxu0
  %727 = vmatprep.mubr.bf16.mxu0 %v237
  %728 = vmatmul.mubr.bf16.gmra.mrb[0].mxu0 %v236
  %v729 = vpop.f32.mrb[0].mxu0
  %v730 = vadd.f32 %v473, %v729
  %v731 = vpop.f32.mrb[0].mxu0
  %v732 = vpop.f32.mrb[0].mxu0
  %v733 = vadd.f32 %v476, %v732
  %v734 = vpop.f32.mrb[0].mxu0
  %735 = vmatprep.mubr.bf16.mxu0 %v239
  %736 = vmatmul.mubr.bf16.gmra.mrb[0].mxu0 %v238
  %v737 = vpop.f32.mrb[0].mxu0
  %v738 = vadd.f32 %v481, %v737
  %v739 = vpop.f32.mrb[0].mxu0
  %v740 = vpop.f32.mrb[0].mxu0
  %v741 = vadd.f32 %v484, %v740
  %v742 = vpop.f32.mrb[0].mxu0
  %743 = vmatprep.mubr.bf16.mxu0 %v241
  %744 = vmatmul.mubr.bf16.gmra.mrb[0].mxu0 %v240
  %v745 = vpop.f32.mrb[0].mxu0
  %v746 = vadd.f32 %v489, %v745
  %v747 = vpop.f32.mrb[0].mxu0
  %v748 = vpop.f32.mrb[0].mxu0
  %v749 = vadd.f32 %v492, %v748
  %v750 = vpop.f32.mrb[0].mxu0
  %751 = vmatprep.mubr.bf16.mxu0 %v243
  %752 = vmatmul.mubr.bf16.gmra.mrb[0].mxu0 %v242
  %v753 = vpop.f32.mrb[0].mxu0
  %v754 = vadd.f32 %v497, %v753
  %v755 = vpop.f32.mrb[0].mxu0
  %v756 = vpop.f32.mrb[0].mxu0
  %v757 = vadd.f32 %v500, %v756
  %v758 = vpop.f32.mrb[0].mxu0
  %759 = vmatprep.mubr.bf16.mxu0 %v245
  %760 = vmatmul.mubr.bf16.gmra.mrb[0].mxu0 %v244
  %v761 = vpop.f32.mrb[0].mxu0
  %v762 = vadd.f32 %v505, %v761
  %v763 = vpop.f32.mrb[0].mxu0
  %v764 = vpop.f32.mrb[0].mxu0
  %v765 = vadd.f32 %v508, %v764
  %v766 = vpop.f32.mrb[0].mxu0
  %767 = vmatprep.mubr.bf16.mxu0 %v247
  %768 = vmatmul.mubr.bf16.gmra.mrb[0].mxu0 %v246
  %v769 = vpop.f32.mrb[0].mxu0
  %v770 = vadd.f32 %v513, %v769
  %v771 = vpop.f32.mrb[0].mxu0
  %v772 = vpop.f32.mrb[0].mxu0
  %v773 = vadd.f32 %v516, %v772
  %v774 = vpop.f32.mrb[0].mxu0
  %775 = vmatprep.mubr.bf16.mxu0 %v249
  %776 = vmatmul.mubr.bf16.gmra.mrb[0].mxu0 %v248
  %v777 = vpop.f32.mrb[0].mxu0
  %v778 = vadd.f32 %v521, %v777
  %v779 = vpop.f32.mrb[0].mxu0
  %v780 = vpop.f32.mrb[0].mxu0
  %v781 = vadd.f32 %v524, %v780
  %v782 = vpop.f32.mrb[0].mxu0
  %783 = vmatprep.mubr.bf16.mxu0 %v251
  %784 = vmatmul.mubr.bf16.gmra.mrb[0].mxu0 %v250
  %v785 = vpop.f32.mrb[0].mxu0
  %v786 = vadd.f32 %v529, %v785
  %v787 = vpop.f32.mrb[0].mxu0
  %v788 = vpop.f32.mrb[0].mxu0
  %v789 = vadd.f32 %v532, %v788
  %v790 = vpop.f32.mrb[0].mxu0
  %791 = vmatprep.mubr.bf16.mxu0 %v253
  %792 = vmatmul.mubr.bf16.gmra.mrb[0].mxu0 %v252
  %v793 = vpop.f32.mrb[0].mxu0
  %v794 = vadd.f32 %v537, %v793
  %v795 = vpop.f32.mrb[0].mxu0
  %v796 = vpop.f32.mrb[0].mxu0
  %v797 = vadd.f32 %v540, %v796
  %v798 = vpop.f32.mrb[0].mxu0
  %799 = vdwg.mxu0
  %v800 = vld [vmem:[%s3] sm:$0xff]
  %v801 = vld [vmem:[%s3 + $0x8] sm:$0xff]
  %v802 = vld [vmem:[%s3 + $0x10] sm:$0xff]
  %v803 = vld [vmem:[%s3 + $0x18] sm:$0xff]
  %v804 = vld [vmem:[%s3 + $0x20] sm:$0xff]
  %v805 = vld [vmem:[%s3 + $0x28] sm:$0xff]
  %v806 = vld [vmem:[%s3 + $0x30] sm:$0xff]
  %v807 = vld [vmem:[%s3 + $0x38] sm:$0xff]
  %v808 = vld [vmem:[%s3 + $0x40] sm:$0xff]
  %v809 = vld [vmem:[%s3 + $0x48] sm:$0xff]
  %v810 = vld [vmem:[%s3 + $0x50] sm:$0xff]
  %v811 = vld [vmem:[%s3 + $0x58] sm:$0xff]
  %v812 = vld [vmem:[%s3 + $0x60] sm:$0xff]
  %v813 = vld [vmem:[%s3 + $0x68] sm:$0xff]
  %v814 = vld [vmem:[%s3 + $0x70] sm:$0xff]
  %v815 = vld [vmem:[%s3 + $0x78] sm:$0xff]
  %v816 = vld [vmem:[%s4] sm:$0x1]
  %v818 = vlaneseq
  %v819 = vshrl.u32 %v818, 7
  %v820 = vsub.s32 0, %v819
  %v821 = vrot.slane %v816, %v820
  %823 = vmatprep.subr.mxu0 0.0
  %824 = vmatpush1.msra.mxu0 %v800
  %825 = vmatprep.subr.mxu0 0.0
  %826 = vmatpush1.msra.mxu0 %v801
  %827 = vmatprep.subr.mxu0 0.0
  %828 = vmatpush1.msra.mxu0 %v802
  %829 = vmatprep.subr.mxu0 0.0
  %830 = vmatpush1.msra.mxu0 %v803
  %831 = vmatprep.subr.mxu0 0.0
  %832 = vmatpush1.msra.mxu0 %v804
  %833 = vmatprep.subr.mxu0 0.0
  %834 = vmatpush1.msra.mxu0 %v805
  %835 = vmatprep.subr.mxu0 0.0
  %836 = vmatpush1.msra.mxu0 %v806
  %837 = vmatprep.subr.mxu0 0.0
  %838 = vmatpush1.msra.mxu0 %v807
  %839 = vmatprep.subr.mxu0 0.0
  %840 = vmatpush1.msra.mxu0 %v808
  %841 = vmatprep.subr.mxu0 0.0
  %842 = vmatpush1.msra.mxu0 %v809
  %843 = vmatprep.subr.mxu0 0.0
  %844 = vmatpush1.msra.mxu0 %v810
  %845 = vmatprep.subr.mxu0 0.0
  %846 = vmatpush1.msra.mxu0 %v811
  %847 = vmatprep.subr.mxu0 0.0
  %848 = vmatpush1.msra.mxu0 %v812
  %849 = vmatprep.subr.mxu0 0.0
  %850 = vmatpush1.msra.mxu0 %v813
  %851 = vmatprep.subr.mxu0 0.0
  %852 = vmatpush1.msra.mxu0 %v814
  %853 = vmatprep.subr.mxu0 0.0
  %854 = vmatpush1.msra.mxu0 %v815
  %855 = vmatprep.subr.mxu0 0.0
  %856 = vmatpush1.msra.mxu0 0.0
  %857 = vmatprep.subr.mxu0 0.0
  %858 = vmatpush1.msra.mxu0 0.0
  %859 = vmatprep.subr.mxu0 0.0
  %860 = vmatpush1.msra.mxu0 0.0
  %861 = vmatprep.subr.mxu0 0.0
  %862 = vmatpush1.msra.mxu0 0.0
  %863 = vmatprep.subr.mxu0 0.0
  %864 = vmatpush1.msra.mxu0 0.0
  %865 = vmatprep.subr.mxu0 0.0
  %866 = vmatpush1.msra.mxu0 0.0
  %867 = vmatprep.subr.mxu0 0.0
  %868 = vmatpush1.msra.mxu0 0.0
  %869 = vmatprep.subr.mxu0 0.0
  %870 = vmatpush1.msra.mxu0 0.0
  %871 = vmatprep.subr.mxu0 0.0
  %872 = vmatpush1.msra.mxu0 0.0
  %873 = vmatprep.subr.mxu0 0.0
  %874 = vmatpush1.msra.mxu0 0.0
  %875 = vmatprep.subr.mxu0 0.0
  %876 = vmatpush1.msra.mxu0 0.0
  %877 = vmatprep.subr.mxu0 0.0
  %878 = vmatpush1.msra.mxu0 0.0
  %879 = vmatprep.subr.mxu0 0.0
  %880 = vmatpush1.msra.mxu0 0.0
  %881 = vmatprep.subr.mxu0 0.0
  %882 = vmatpush1.msra.mxu0 0.0
  %883 = vmatprep.subr.mxu0 0.0
  %884 = vmatpush1.msra.mxu0 0.0
  %885 = vmatprep.subr.mxu0 0.0
  %886 = vmatpush1.msra.mxu0 0.0
  %887 = vmatprep.mubr.f32.mxu0 0.0
  %888 = vmatmul.mubr.f32.gmra.mrb[0].mxu0 %v674
  %v889 = vpop.f32.mrb[0].mxu0
  %v890 = vadd.f32 %v821, %v889
  %v891 = vpop.f32.mrb[0].mxu0
  %892 = vmatprep.mubr.f32.mxu0 0.0
  %893 = vmatmul.mubr.f32.gmra.mrb[0].mxu0 %v677
  %v894 = vpop.f32.mrb[0].mxu0
  %v895 = vadd.f32 %v821, %v894
  %v896 = vpop.f32.mrb[0].mxu0
  %897 = vmatprep.mubr.f32.mxu0 0.0
  %898 = vmatmul.mubr.f32.gmra.mrb[0].mxu0 %v682
  %v899 = vpop.f32.mrb[0].mxu0
  %v900 = vadd.f32 %v821, %v899
  %v901 = vpop.f32.mrb[0].mxu0
  %902 = vmatprep.mubr.f32.mxu0 0.0
  %903 = vmatmul.mubr.f32.gmra.mrb[0].mxu0 %v685
  %v904 = vpop.f32.mrb[0].mxu0
  %v905 = vadd.f32 %v821, %v904
  %v906 = vpop.f32.mrb[0].mxu0
  %907 = vmatprep.mubr.f32.mxu0 0.0
  %908 = vmatmul.mubr.f32.gmra.mrb[0].mxu0 %v690
  %v909 = vpop.f32.mrb[0].mxu0
  %v910 = vadd.f32 %v821, %v909
  %v911 = vpop.f32.mrb[0].mxu0
  %912 = vmatprep.mubr.f32.mxu0 0.0
  %913 = vmatmul.mubr.f32.gmra.mrb[0].mxu0 %v693
  %v914 = vpop.f32.mrb[0].mxu0
  %v915 = vadd.f32 %v821, %v914
  %v916 = vpop.f32.mrb[0].mxu0
  %917 = vmatprep.mubr.f32.mxu0 0.0
  %918 = vmatmul.mubr.f32.gmra.mrb[0].mxu0 %v698
  %v919 = vpop.f32.mrb[0].mxu0
  %v920 = vadd.f32 %v821, %v919
  %v921 = vpop.f32.mrb[0].mxu0
  %922 = vmatprep.mubr.f32.mxu0 0.0
  %923 = vmatmul.mubr.f32.gmra.mrb[0].mxu0 %v701
  %v924 = vpop.f32.mrb[0].mxu0
  %v925 = vadd.f32 %v821, %v924
  %v926 = vpop.f32.mrb[0].mxu0
  %927 = vmatprep.mubr.f32.mxu0 0.0
  %928 = vmatmul.mubr.f32.gmra.mrb[0].mxu0 %v706
  %v929 = vpop.f32.mrb[0].mxu0
  %v930 = vadd.f32 %v821, %v929
  %v931 = vpop.f32.mrb[0].mxu0
  %932 = vmatprep.mubr.f32.mxu0 0.0
  %933 = vmatmul.mubr.f32.gmra.mrb[0].mxu0 %v709
  %v934 = vpop.f32.mrb[0].mxu0
  %v935 = vadd.f32 %v821, %v934
  %v936 = vpop.f32.mrb[0].mxu0
  %937 = vmatprep.mubr.f32.mxu0 0.0
  %938 = vmatmul.mubr.f32.gmra.mrb[0].mxu0 %v714
  %v939 = vpop.f32.mrb[0].mxu0
  %v940 = vadd.f32 %v821, %v939
  %v941 = vpop.f32.mrb[0].mxu0
  %942 = vmatprep.mubr.f32.mxu0 0.0
  %943 = vmatmul.mubr.f32.gmra.mrb[0].mxu0 %v717
  %v944 = vpop.f32.mrb[0].mxu0
  %v945 = vadd.f32 %v821, %v944
  %v946 = vpop.f32.mrb[0].mxu0
  %947 = vmatprep.mubr.f32.mxu0 0.0
  %948 = vmatmul.mubr.f32.gmra.mrb[0].mxu0 %v722
  %v949 = vpop.f32.mrb[0].mxu0
  %v950 = vadd.f32 %v821, %v949
  %v951 = vpop.f32.mrb[0].mxu0
  %952 = vmatprep.mubr.f32.mxu0 0.0
  %953 = vmatmul.mubr.f32.gmra.mrb[0].mxu0 %v725
  %v954 = vpop.f32.mrb[0].mxu0
  %v955 = vadd.f32 %v821, %v954
  %v956 = vpop.f32.mrb[0].mxu0
  %957 = vmatprep.mubr.f32.mxu0 0.0
  %958 = vmatmul.mubr.f32.gmra.mrb[0].mxu0 %v730
  %v959 = vpop.f32.mrb[0].mxu0
  %v960 = vadd.f32 %v821, %v959
  %v961 = vpop.f32.mrb[0].mxu0
  %962 = vmatprep.mubr.f32.mxu0 0.0
  %963 = vmatmul.mubr.f32.gmra.mrb[0].mxu0 %v733
  %v964 = vpop.f32.mrb[0].mxu0
  %v965 = vadd.f32 %v821, %v964
  %v966 = vpop.f32.mrb[0].mxu0
  %967 = vmatprep.mubr.f32.mxu0 0.0
  %968 = vmatmul.mubr.f32.gmra.mrb[0].mxu0 %v738
  %v969 = vpop.f32.mrb[0].mxu0
  %v970 = vadd.f32 %v821, %v969
  %v971 = vpop.f32.mrb[0].mxu0
  %972 = vmatprep.mubr.f32.mxu0 0.0
  %973 = vmatmul.mubr.f32.gmra.mrb[0].mxu0 %v741
  %v974 = vpop.f32.mrb[0].mxu0
  %v975 = vadd.f32 %v821, %v974
  %v976 = vpop.f32.mrb[0].mxu0
  %977 = vmatprep.mubr.f32.mxu0 0.0
  %978 = vmatmul.mubr.f32.gmra.mrb[0].mxu0 %v746
  %v979 = vpop.f32.mrb[0].mxu0
  %v980 = vadd.f32 %v821, %v979
  %v981 = vpop.f32.mrb[0].mxu0
  %982 = vmatprep.mubr.f32.mxu0 0.0
  %983 = vmatmul.mubr.f32.gmra.mrb[0].mxu0 %v749
  %v984 = vpop.f32.mrb[0].mxu0
  %v985 = vadd.f32 %v821, %v984
  %v986 = vpop.f32.mrb[0].mxu0
  %987 = vmatprep.mubr.f32.mxu0 0.0
  %988 = vmatmul.mubr.f32.gmra.mrb[0].mxu0 %v754
  %v989 = vpop.f32.mrb[0].mxu0
  %v990 = vadd.f32 %v821, %v989
  %v991 = vpop.f32.mrb[0].mxu0
  %992 = vmatprep.mubr.f32.mxu0 0.0
  %993 = vmatmul.mubr.f32.gmra.mrb[0].mxu0 %v757
  %v994 = vpop.f32.mrb[0].mxu0
  %v995 = vadd.f32 %v821, %v994
  %v996 = vpop.f32.mrb[0].mxu0
  %997 = vmatprep.mubr.f32.mxu0 0.0
  %998 = vmatmul.mubr.f32.gmra.mrb[0].mxu0 %v762
  %v999 = vpop.f32.mrb[0].mxu0
  %v1000 = vadd.f32 %v821, %v999
  %v1001 = vpop.f32.mrb[0].mxu0
  %1002 = vmatprep.mubr.f32.mxu0 0.0
  %1003 = vmatmul.mubr.f32.gmra.mrb[0].mxu0 %v765
  %v1004 = vpop.f32.mrb[0].mxu0
  %v1005 = vadd.f32 %v821, %v1004
  %v1006 = vpop.f32.mrb[0].mxu0
  %1007 = vmatprep.mubr.f32.mxu0 0.0
  %1008 = vmatmul.mubr.f32.gmra.mrb[0].mxu0 %v770
  %v1009 = vpop.f32.mrb[0].mxu0
  %v1010 = vadd.f32 %v821, %v1009
  %v1011 = vpop.f32.mrb[0].mxu0
  %1012 = vmatprep.mubr.f32.mxu0 0.0
  %1013 = vmatmul.mubr.f32.gmra.mrb[0].mxu0 %v773
  %v1014 = vpop.f32.mrb[0].mxu0
  %v1015 = vadd.f32 %v821, %v1014
  %v1016 = vpop.f32.mrb[0].mxu0
  %1017 = vmatprep.mubr.f32.mxu0 0.0
  %1018 = vmatmul.mubr.f32.gmra.mrb[0].mxu0 %v778
  %v1019 = vpop.f32.mrb[0].mxu0
  %v1020 = vadd.f32 %v821, %v1019
  %v1021 = vpop.f32.mrb[0].mxu0
  %1022 = vmatprep.mubr.f32.mxu0 0.0
  %1023 = vmatmul.mubr.f32.gmra.mrb[0].mxu0 %v781
  %v1024 = vpop.f32.mrb[0].mxu0
  %v1025 = vadd.f32 %v821, %v1024
  %v1026 = vpop.f32.mrb[0].mxu0
  %1027 = vmatprep.mubr.f32.mxu0 0.0
  %1028 = vmatmul.mubr.f32.gmra.mrb[0].mxu0 %v786
  %v1029 = vpop.f32.mrb[0].mxu0
  %v1030 = vadd.f32 %v821, %v1029
  %v1031 = vpop.f32.mrb[0].mxu0
  %1032 = vmatprep.mubr.f32.mxu0 0.0
  %1033 = vmatmul.mubr.f32.gmra.mrb[0].mxu0 %v789
  %v1034 = vpop.f32.mrb[0].mxu0
  %v1035 = vadd.f32 %v821, %v1034
  %v1036 = vpop.f32.mrb[0].mxu0
  %1037 = vmatprep.mubr.f32.mxu0 0.0
  %1038 = vmatmul.mubr.f32.gmra.mrb[0].mxu0 %v794
  %v1039 = vpop.f32.mrb[0].mxu0
  %v1040 = vadd.f32 %v821, %v1039
  %v1041 = vpop.f32.mrb[0].mxu0
  %1042 = vmatprep.mubr.f32.mxu0 0.0
  %1043 = vmatmul.mubr.f32.gmra.mrb[0].mxu0 %v797
  %v1044 = vpop.f32.mrb[0].mxu0
  %v1045 = vadd.f32 %v821, %v1044
  %v1046 = vpop.f32.mrb[0].mxu0
  %1047 = vdwg.mxu0
  %v1048 = vmax.f32 %v890, 0.0
  %v1049 = vmax.f32 %v895, 0.0
  %v1050 = vmax.f32 %v900, 0.0
  %v1051 = vmax.f32 %v905, 0.0
  %v1052 = vmax.f32 %v910, 0.0
  %v1053 = vmax.f32 %v915, 0.0
  %v1054 = vmax.f32 %v920, 0.0
  %v1055 = vmax.f32 %v925, 0.0
  %v1056 = vmax.f32 %v930, 0.0
  %v1057 = vmax.f32 %v935, 0.0
  %v1058 = vmax.f32 %v940, 0.0
  %v1059 = vmax.f32 %v945, 0.0
  %v1060 = vmax.f32 %v950, 0.0
  %v1061 = vmax.f32 %v955, 0.0
  %v1062 = vmax.f32 %v960, 0.0
  %v1063 = vmax.f32 %v965, 0.0
  %v1064 = vmax.f32 %v970, 0.0
  %v1065 = vmax.f32 %v975, 0.0
  %v1066 = vmax.f32 %v980, 0.0
  %v1067 = vmax.f32 %v985, 0.0
  %v1068 = vmax.f32 %v990, 0.0
  %v1069 = vmax.f32 %v995, 0.0
  %v1070 = vmax.f32 %v1000, 0.0
  %v1071 = vmax.f32 %v1005, 0.0
  %v1072 = vmax.f32 %v1010, 0.0
  %v1073 = vmax.f32 %v1015, 0.0
  %v1074 = vmax.f32 %v1020, 0.0
  %v1075 = vmax.f32 %v1025, 0.0
  %v1076 = vmax.f32 %v1030, 0.0
  %v1077 = vmax.f32 %v1035, 0.0
  %v1078 = vmax.f32 %v1040, 0.0
  %v1079 = vmax.f32 %v1045, 0.0
  %v1080 = vld [vmem:[%s5] sm:$0xff]
  %v1081 = vld [vmem:[%s5 + $0x8] sm:$0xff]
  %v1082 = vld [vmem:[%s5 + $0x10] sm:$0xff]
  %v1083 = vld [vmem:[%s5 + $0x18] sm:$0xff]
  %v1084 = vld [vmem:[%s5 + $0x20] sm:$0xff]
  %v1085 = vld [vmem:[%s5 + $0x28] sm:$0xff]
  %v1086 = vld [vmem:[%s5 + $0x30] sm:$0xff]
  %v1087 = vld [vmem:[%s5 + $0x38] sm:$0xff]
  %v1088 = vld [vmem:[%s5 + $0x40] sm:$0xff]
  %v1089 = vld [vmem:[%s5 + $0x48] sm:$0xff]
  %v1090 = vld [vmem:[%s5 + $0x50] sm:$0xff]
  %v1091 = vld [vmem:[%s5 + $0x58] sm:$0xff]
  %v1092 = vld [vmem:[%s5 + $0x60] sm:$0xff]
  %v1093 = vld [vmem:[%s5 + $0x68] sm:$0xff]
  %v1094 = vld [vmem:[%s5 + $0x70] sm:$0xff]
  %v1095 = vld [vmem:[%s5 + $0x78] sm:$0xff]
  %v1096 = vld [vmem:[%s6] sm:$0x1]
  %v1098 = vlaneseq
  %v1099 = vshrl.u32 %v1098, 7
  %v1100 = vsub.s32 0, %v1099
  %v1101 = vrot.slane %v1096, %v1100
  %1103 = vmatprep.subr.mxu0 0.0
  %1104 = vmatpush1.msra.mxu0 %v1080
  %1105 = vmatprep.subr.mxu0 0.0
  %1106 = vmatpush1.msra.mxu0 %v1081
  %1107 = vmatprep.subr.mxu0 0.0
  %1108 = vmatpush1.msra.mxu0 %v1082
  %1109 = vmatprep.subr.mxu0 0.0
  %1110 = vmatpush1.msra.mxu0 %v1083
  %1111 = vmatprep.subr.mxu0 0.0
  %1112 = vmatpush1.msra.mxu0 %v1084
  %1113 = vmatprep.subr.mxu0 0.0
  %1114 = vmatpush1.msra.mxu0 %v1085
  %1115 = vmatprep.subr.mxu0 0.0
  %1116 = vmatpush1.msra.mxu0 %v1086
  %1117 = vmatprep.subr.mxu0 0.0
  %1118 = vmatpush1.msra.mxu0 %v1087
  %1119 = vmatprep.subr.mxu0 0.0
  %1120 = vmatpush1.msra.mxu0 %v1088
  %1121 = vmatprep.subr.mxu0 0.0
  %1122 = vmatpush1.msra.mxu0 %v1089
  %1123 = vmatprep.subr.mxu0 0.0
  %1124 = vmatpush1.msra.mxu0 %v1090
  %1125 = vmatprep.subr.mxu0 0.0
  %1126 = vmatpush1.msra.mxu0 %v1091
  %1127 = vmatprep.subr.mxu0 0.0
  %1128 = vmatpush1.msra.mxu0 %v1092
  %1129 = vmatprep.subr.mxu0 0.0
  %1130 = vmatpush1.msra.mxu0 %v1093
  %1131 = vmatprep.subr.mxu0 0.0
  %1132 = vmatpush1.msra.mxu0 %v1094
  %1133 = vmatprep.subr.mxu0 0.0
  %1134 = vmatpush1.msra.mxu0 %v1095
  %1135 = vmatprep.subr.mxu0 0.0
  %1136 = vmatpush1.msra.mxu0 0.0
  %1137 = vmatprep.subr.mxu0 0.0
  %1138 = vmatpush1.msra.mxu0 0.0
  %1139 = vmatprep.subr.mxu0 0.0
  %1140 = vmatpush1.msra.mxu0 0.0
  %1141 = vmatprep.subr.mxu0 0.0
  %1142 = vmatpush1.msra.mxu0 0.0
  %1143 = vmatprep.subr.mxu0 0.0
  %1144 = vmatpush1.msra.mxu0 0.0
  %1145 = vmatprep.subr.mxu0 0.0
  %1146 = vmatpush1.msra.mxu0 0.0
  %1147 = vmatprep.subr.mxu0 0.0
  %1148 = vmatpush1.msra.mxu0 0.0
  %1149 = vmatprep.subr.mxu0 0.0
  %1150 = vmatpush1.msra.mxu0 0.0
  %1151 = vmatprep.subr.mxu0 0.0
  %1152 = vmatpush1.msra.mxu0 0.0
  %1153 = vmatprep.subr.mxu0 0.0
  %1154 = vmatpush1.msra.mxu0 0.0
  %1155 = vmatprep.subr.mxu0 0.0
  %1156 = vmatpush1.msra.mxu0 0.0
  %1157 = vmatprep.subr.mxu0 0.0
  %1158 = vmatpush1.msra.mxu0 0.0
  %1159 = vmatprep.subr.mxu0 0.0
  %1160 = vmatpush1.msra.mxu0 0.0
  %1161 = vmatprep.subr.mxu0 0.0
  %1162 = vmatpush1.msra.mxu0 0.0
  %1163 = vmatprep.subr.mxu0 0.0
  %1164 = vmatpush1.msra.mxu0 0.0
  %1165 = vmatprep.subr.mxu0 0.0
  %1166 = vmatpush1.msra.mxu0 0.0
  %1167 = vmatprep.mubr.f32.mxu0 0.0
  %1168 = vmatmul.mubr.f32.gmra.mrb[0].mxu0 %v1048
  %v1169 = vpop.f32.mrb[0].mxu0
  %v1170 = vadd.f32 %v1101, %v1169
  %v1171 = vpop.f32.mrb[0].mxu0
  %1172 = vmatprep.mubr.f32.mxu0 0.0
  %1173 = vmatmul.mubr.f32.gmra.mrb[0].mxu0 %v1049
  %v1174 = vpop.f32.mrb[0].mxu0
  %v1175 = vadd.f32 %v1101, %v1174
  %v1176 = vpop.f32.mrb[0].mxu0
  %1177 = vmatprep.mubr.f32.mxu0 0.0
  %1178 = vmatmul.mubr.f32.gmra.mrb[0].mxu0 %v1050
  %v1179 = vpop.f32.mrb[0].mxu0
  %v1180 = vadd.f32 %v1101, %v1179
  %v1181 = vpop.f32.mrb[0].mxu0
  %1182 = vmatprep.mubr.f32.mxu0 0.0
  %1183 = vmatmul.mubr.f32.gmra.mrb[0].mxu0 %v1051
  %v1184 = vpop.f32.mrb[0].mxu0
  %v1185 = vadd.f32 %v1101, %v1184
  %v1186 = vpop.f32.mrb[0].mxu0
  %1187 = vmatprep.mubr.f32.mxu0 0.0
  %1188 = vmatmul.mubr.f32.gmra.mrb[0].mxu0 %v1052
  %v1189 = vpop.f32.mrb[0].mxu0
  %v1190 = vadd.f32 %v1101, %v1189
  %v1191 = vpop.f32.mrb[0].mxu0
  %1192 = vmatprep.mubr.f32.mxu0 0.0
  %1193 = vmatmul.mubr.f32.gmra.mrb[0].mxu0 %v1053
  %v1194 = vpop.f32.mrb[0].mxu0
  %v1195 = vadd.f32 %v1101, %v1194
  %v1196 = vpop.f32.mrb[0].mxu0
  %1197 = vmatprep.mubr.f32.mxu0 0.0
  %1198 = vmatmul.mubr.f32.gmra.mrb[0].mxu0 %v1054
  %v1199 = vpop.f32.mrb[0].mxu0
  %v1200 = vadd.f32 %v1101, %v1199
  %v1201 = vpop.f32.mrb[0].mxu0
  %1202 = vmatprep.mubr.f32.mxu0 0.0
  %1203 = vmatmul.mubr.f32.gmra.mrb[0].mxu0 %v1055
  %v1204 = vpop.f32.mrb[0].mxu0
  %v1205 = vadd.f32 %v1101, %v1204
  %v1206 = vpop.f32.mrb[0].mxu0
  %1207 = vmatprep.mubr.f32.mxu0 0.0
  %1208 = vmatmul.mubr.f32.gmra.mrb[0].mxu0 %v1056
  %v1209 = vpop.f32.mrb[0].mxu0
  %v1210 = vadd.f32 %v1101, %v1209
  %v1211 = vpop.f32.mrb[0].mxu0
  %1212 = vmatprep.mubr.f32.mxu0 0.0
  %1213 = vmatmul.mubr.f32.gmra.mrb[0].mxu0 %v1057
  %v1214 = vpop.f32.mrb[0].mxu0
  %v1215 = vadd.f32 %v1101, %v1214
  %v1216 = vpop.f32.mrb[0].mxu0
  %1217 = vmatprep.mubr.f32.mxu0 0.0
  %1218 = vmatmul.mubr.f32.gmra.mrb[0].mxu0 %v1058
  %v1219 = vpop.f32.mrb[0].mxu0
  %v1220 = vadd.f32 %v1101, %v1219
  %v1221 = vpop.f32.mrb[0].mxu0
  %1222 = vmatprep.mubr.f32.mxu0 0.0
  %1223 = vmatmul.mubr.f32.gmra.mrb[0].mxu0 %v1059
  %v1224 = vpop.f32.mrb[0].mxu0
  %v1225 = vadd.f32 %v1101, %v1224
  %v1226 = vpop.f32.mrb[0].mxu0
  %1227 = vmatprep.mubr.f32.mxu0 0.0
  %1228 = vmatmul.mubr.f32.gmra.mrb[0].mxu0 %v1060
  %v1229 = vpop.f32.mrb[0].mxu0
  %v1230 = vadd.f32 %v1101, %v1229
  %v1231 = vpop.f32.mrb[0].mxu0
  %1232 = vmatprep.mubr.f32.mxu0 0.0
  %1233 = vmatmul.mubr.f32.gmra.mrb[0].mxu0 %v1061
  %v1234 = vpop.f32.mrb[0].mxu0
  %v1235 = vadd.f32 %v1101, %v1234
  %v1236 = vpop.f32.mrb[0].mxu0
  %1237 = vmatprep.mubr.f32.mxu0 0.0
  %1238 = vmatmul.mubr.f32.gmra.mrb[0].mxu0 %v1062
  %v1239 = vpop.f32.mrb[0].mxu0
  %v1240 = vadd.f32 %v1101, %v1239
  %v1241 = vpop.f32.mrb[0].mxu0
  %1242 = vmatprep.mubr.f32.mxu0 0.0
  %1243 = vmatmul.mubr.f32.gmra.mrb[0].mxu0 %v1063
  %v1244 = vpop.f32.mrb[0].mxu0
  %v1245 = vadd.f32 %v1101, %v1244
  %v1246 = vpop.f32.mrb[0].mxu0
  %1247 = vmatprep.mubr.f32.mxu0 0.0
  %1248 = vmatmul.mubr.f32.gmra.mrb[0].mxu0 %v1064
  %v1249 = vpop.f32.mrb[0].mxu0
  %v1250 = vadd.f32 %v1101, %v1249
  %v1251 = vpop.f32.mrb[0].mxu0
  %1252 = vmatprep.mubr.f32.mxu0 0.0
  %1253 = vmatmul.mubr.f32.gmra.mrb[0].mxu0 %v1065
  %v1254 = vpop.f32.mrb[0].mxu0
  %v1255 = vadd.f32 %v1101, %v1254
  %v1256 = vpop.f32.mrb[0].mxu0
  %1257 = vmatprep.mubr.f32.mxu0 0.0
  %1258 = vmatmul.mubr.f32.gmra.mrb[0].mxu0 %v1066
  %v1259 = vpop.f32.mrb[0].mxu0
  %v1260 = vadd.f32 %v1101, %v1259
  %v1261 = vpop.f32.mrb[0].mxu0
  %1262 = vmatprep.mubr.f32.mxu0 0.0
  %1263 = vmatmul.mubr.f32.gmra.mrb[0].mxu0 %v1067
  %v1264 = vpop.f32.mrb[0].mxu0
  %v1265 = vadd.f32 %v1101, %v1264
  %v1266 = vpop.f32.mrb[0].mxu0
  %1267 = vmatprep.mubr.f32.mxu0 0.0
  %1268 = vmatmul.mubr.f32.gmra.mrb[0].mxu0 %v1068
  %v1269 = vpop.f32.mrb[0].mxu0
  %v1270 = vadd.f32 %v1101, %v1269
  %v1271 = vpop.f32.mrb[0].mxu0
  %1272 = vmatprep.mubr.f32.mxu0 0.0
  %1273 = vmatmul.mubr.f32.gmra.mrb[0].mxu0 %v1069
  %v1274 = vpop.f32.mrb[0].mxu0
  %v1275 = vadd.f32 %v1101, %v1274
  %v1276 = vpop.f32.mrb[0].mxu0
  %1277 = vmatprep.mubr.f32.mxu0 0.0
  %1278 = vmatmul.mubr.f32.gmra.mrb[0].mxu0 %v1070
  %v1279 = vpop.f32.mrb[0].mxu0
  %v1280 = vadd.f32 %v1101, %v1279
  %v1281 = vpop.f32.mrb[0].mxu0
  %1282 = vmatprep.mubr.f32.mxu0 0.0
  %1283 = vmatmul.mubr.f32.gmra.mrb[0].mxu0 %v1071
  %v1284 = vpop.f32.mrb[0].mxu0
  %v1285 = vadd.f32 %v1101, %v1284
  %v1286 = vpop.f32.mrb[0].mxu0
  %1287 = vmatprep.mubr.f32.mxu0 0.0
  %1288 = vmatmul.mubr.f32.gmra.mrb[0].mxu0 %v1072
  %v1289 = vpop.f32.mrb[0].mxu0
  %v1290 = vadd.f32 %v1101, %v1289
  %v1291 = vpop.f32.mrb[0].mxu0
  %1292 = vmatprep.mubr.f32.mxu0 0.0
  %1293 = vmatmul.mubr.f32.gmra.mrb[0].mxu0 %v1073
  %v1294 = vpop.f32.mrb[0].mxu0
  %v1295 = vadd.f32 %v1101, %v1294
  %v1296 = vpop.f32.mrb[0].mxu0
  %1297 = vmatprep.mubr.f32.mxu0 0.0
  %1298 = vmatmul.mubr.f32.gmra.mrb[0].mxu0 %v1074
  %v1299 = vpop.f32.mrb[0].mxu0
  %v1300 = vadd.f32 %v1101, %v1299
  %v1301 = vpop.f32.mrb[0].mxu0
  %1302 = vmatprep.mubr.f32.mxu0 0.0
  %1303 = vmatmul.mubr.f32.gmra.mrb[0].mxu0 %v1075
  %v1304 = vpop.f32.mrb[0].mxu0
  %v1305 = vadd.f32 %v1101, %v1304
  %v1306 = vpop.f32.mrb[0].mxu0
  %1307 = vmatprep.mubr.f32.mxu0 0.0
  %1308 = vmatmul.mubr.f32.gmra.mrb[0].mxu0 %v1076
  %v1309 = vpop.f32.mrb[0].mxu0
  %v1310 = vadd.f32 %v1101, %v1309
  %v1311 = vpop.f32.mrb[0].mxu0
  %1312 = vmatprep.mubr.f32.mxu0 0.0
  %1313 = vmatmul.mubr.f32.gmra.mrb[0].mxu0 %v1077
  %v1314 = vpop.f32.mrb[0].mxu0
  %v1315 = vadd.f32 %v1101, %v1314
  %v1316 = vpop.f32.mrb[0].mxu0
  %1317 = vmatprep.mubr.f32.mxu0 0.0
  %1318 = vmatmul.mubr.f32.gmra.mrb[0].mxu0 %v1078
  %v1319 = vpop.f32.mrb[0].mxu0
  %v1320 = vadd.f32 %v1101, %v1319
  %v1321 = vpop.f32.mrb[0].mxu0
  %1322 = vmatprep.mubr.f32.mxu0 0.0
  %1323 = vmatmul.mubr.f32.gmra.mrb[0].mxu0 %v1079
  %v1324 = vpop.f32.mrb[0].mxu0
  %v1325 = vadd.f32 %v1101, %v1324
  %v1326 = vpop.f32.mrb[0].mxu0
  %1327 = vdwg.mxu0
  %v1328 = vmax.f32 %v1170, 0.0
  %v1329 = vmax.f32 %v1175, 0.0
  %v1330 = vmax.f32 %v1180, 0.0
  %v1331 = vmax.f32 %v1185, 0.0
  %v1332 = vmax.f32 %v1190, 0.0
  %v1333 = vmax.f32 %v1195, 0.0
  %v1334 = vmax.f32 %v1200, 0.0
  %v1335 = vmax.f32 %v1205, 0.0
  %v1336 = vmax.f32 %v1210, 0.0
  %v1337 = vmax.f32 %v1215, 0.0
  %v1338 = vmax.f32 %v1220, 0.0
  %v1339 = vmax.f32 %v1225, 0.0
  %v1340 = vmax.f32 %v1230, 0.0
  %v1341 = vmax.f32 %v1235, 0.0
  %v1342 = vmax.f32 %v1240, 0.0
  %v1343 = vmax.f32 %v1245, 0.0
  %v1344 = vmax.f32 %v1250, 0.0
  %v1345 = vmax.f32 %v1255, 0.0
  %v1346 = vmax.f32 %v1260, 0.0
  %v1347 = vmax.f32 %v1265, 0.0
  %v1348 = vmax.f32 %v1270, 0.0
  %v1349 = vmax.f32 %v1275, 0.0
  %v1350 = vmax.f32 %v1280, 0.0
  %v1351 = vmax.f32 %v1285, 0.0
  %v1352 = vmax.f32 %v1290, 0.0
  %v1353 = vmax.f32 %v1295, 0.0
  %v1354 = vmax.f32 %v1300, 0.0
  %v1355 = vmax.f32 %v1305, 0.0
  %v1356 = vmax.f32 %v1310, 0.0
  %v1357 = vmax.f32 %v1315, 0.0
  %v1358 = vmax.f32 %v1320, 0.0
  %v1359 = vmax.f32 %v1325, 0.0
  %1360 = vst [vmem:[%s7] sm:$0xff] %v1328
  %1361 = vst [vmem:[%s7 + $0x8] sm:$0xff] %v1329
  %1362 = vst [vmem:[%s7 + $0x10] sm:$0xff] %v1330
  %1363 = vst [vmem:[%s7 + $0x18] sm:$0xff] %v1331
  %1364 = vst [vmem:[%s7 + $0x20] sm:$0xff] %v1332
  %1365 = vst [vmem:[%s7 + $0x28] sm:$0xff] %v1333
  %1366 = vst [vmem:[%s7 + $0x30] sm:$0xff] %v1334
  %1367 = vst [vmem:[%s7 + $0x38] sm:$0xff] %v1335
  %1368 = vst [vmem:[%s7 + $0x40] sm:$0xff] %v1336
  %1369 = vst [vmem:[%s7 + $0x48] sm:$0xff] %v1337
  %1370 = vst [vmem:[%s7 + $0x50] sm:$0xff] %v1338
  %1371 = vst [vmem:[%s7 + $0x58] sm:$0xff] %v1339
  %1372 = vst [vmem:[%s7 + $0x60] sm:$0xff] %v1340
  %1373 = vst [vmem:[%s7 + $0x68] sm:$0xff] %v1341
  %1374 = vst [vmem:[%s7 + $0x70] sm:$0xff] %v1342
  %1375 = vst [vmem:[%s7 + $0x78] sm:$0xff] %v1343
  %1376 = vst [vmem:[%s7 + $0x80] sm:$0xff] %v1344
  %1377 = vst [vmem:[%s7 + $0x88] sm:$0xff] %v1345
  %1378 = vst [vmem:[%s7 + $0x90] sm:$0xff] %v1346
  %1379 = vst [vmem:[%s7 + $0x98] sm:$0xff] %v1347
  %1380 = vst [vmem:[%s7 + $0xa0] sm:$0xff] %v1348
  %1381 = vst [vmem:[%s7 + $0xa8] sm:$0xff] %v1349
  %1382 = vst [vmem:[%s7 + $0xb0] sm:$0xff] %v1350
  %1383 = vst [vmem:[%s7 + $0xb8] sm:$0xff] %v1351
  %1384 = vst [vmem:[%s7 + $0xc0] sm:$0xff] %v1352
  %1385 = vst [vmem:[%s7 + $0xc8] sm:$0xff] %v1353
  %1386 = vst [vmem:[%s7 + $0xd0] sm:$0xff] %v1354
  %1387 = vst [vmem:[%s7 + $0xd8] sm:$0xff] %v1355
  %1388 = vst [vmem:[%s7 + $0xe0] sm:$0xff] %v1356
  %1389 = vst [vmem:[%s7 + $0xe8] sm:$0xff] %v1357
  %1390 = vst [vmem:[%s7 + $0xf0] sm:$0xff] %v1358
  %1391 = vst [vmem:[%s7 + $0xf8] sm:$0xff] %v1359
  %v1392 = vlaneseq
  %v1393 = vshrl.u32 %v1392, 7
  %v1394 = vadd.s32 %v1393, 8
  %v1395 = vadd.s32 %v1393, 16
  %v1396 = vadd.s32 %v1393, 24
  %v1397 = vadd.s32 %v1393, 32
  %v1398 = vadd.s32 %v1393, 40
  %v1399 = vadd.s32 %v1393, 48
  %v1400 = vadd.s32 %v1393, 56
  %v1401 = vadd.s32 %v1393, 64
  %v1402 = vadd.s32 %v1393, 72
  %v1403 = vadd.s32 %v1393, 80
  %v1404 = vadd.s32 %v1393, 88
  %v1405 = vadd.s32 %v1393, 96
  %v1406 = vadd.s32 %v1393, 104
  %v1407 = vadd.s32 %v1393, 112
  %v1408 = vadd.s32 %v1393, 120
  %v1409 = vadd.s32 %v1393, 128
  %v1410 = vadd.s32 %v1393, 136
  %v1411 = vadd.s32 %v1393, 144
  %v1412 = vadd.s32 %v1393, 152
  %v1413 = vadd.s32 %v1393, 160
  %v1414 = vadd.s32 %v1393, 168
  %v1415 = vadd.s32 %v1393, 176
  %v1416 = vadd.s32 %v1393, 184
  %v1417 = vadd.s32 %v1393, 192
  %v1418 = vadd.s32 %v1393, 200
  %v1419 = vadd.s32 %v1393, 208
  %v1420 = vadd.s32 %v1393, 216
  %v1421 = vadd.s32 %v1393, 224
  %v1422 = vadd.s32 %v1393, 232
  %v1423 = vadd.s32 %v1393, 240
  %v1424 = vadd.s32 %v1393, 248
  %s1425 = smul.u32 0, 256
  %v1426 = vstv %s1425
  %v1427 = vadd.s32 %v1393, %v1426
  %v1428 = vadd.s32 %v1394, %v1426
  %v1429 = vadd.s32 %v1395, %v1426
  %v1430 = vadd.s32 %v1396, %v1426
  %v1431 = vadd.s32 %v1397, %v1426
  %v1432 = vadd.s32 %v1398, %v1426
  %v1433 = vadd.s32 %v1399, %v1426
  %v1434 = vadd.s32 %v1400, %v1426
  %v1435 = vadd.s32 %v1401, %v1426
  %v1436 = vadd.s32 %v1402, %v1426
  %v1437 = vadd.s32 %v1403, %v1426
  %v1438 = vadd.s32 %v1404, %v1426
  %v1439 = vadd.s32 %v1405, %v1426
  %v1440 = vadd.s32 %v1406, %v1426
  %v1441 = vadd.s32 %v1407, %v1426
  %v1442 = vadd.s32 %v1408, %v1426
  %v1443 = vadd.s32 %v1409, %v1426
  %v1444 = vadd.s32 %v1410, %v1426
  %v1445 = vadd.s32 %v1411, %v1426
  %v1446 = vadd.s32 %v1412, %v1426
  %v1447 = vadd.s32 %v1413, %v1426
  %v1448 = vadd.s32 %v1414, %v1426
  %v1449 = vadd.s32 %v1415, %v1426
  %v1450 = vadd.s32 %v1416, %v1426
  %v1451 = vadd.s32 %v1417, %v1426
  %v1452 = vadd.s32 %v1418, %v1426
  %v1453 = vadd.s32 %v1419, %v1426
  %v1454 = vadd.s32 %v1420, %v1426
  %v1455 = vadd.s32 %v1421, %v1426
  %v1456 = vadd.s32 %v1422, %v1426
  %v1457 = vadd.s32 %v1423, %v1426
  %v1458 = vadd.s32 %v1424, %v1426
  %vm1459 = vcmp.lt.s32.totalorder %v1427, 256
  %vm1460 = vcmp.lt.s32.totalorder %v1428, 256
  %vm1461 = vcmp.lt.s32.totalorder %v1429, 256
  %vm1462 = vcmp.lt.s32.totalorder %v1430, 256
  %vm1463 = vcmp.lt.s32.totalorder %v1431, 256
  %vm1464 = vcmp.lt.s32.totalorder %v1432, 256
  %vm1465 = vcmp.lt.s32.totalorder %v1433, 256
  %vm1466 = vcmp.lt.s32.totalorder %v1434, 256
  %vm1467 = vcmp.lt.s32.totalorder %v1435, 256
  %vm1468 = vcmp.lt.s32.totalorder %v1436, 256
  %vm1469 = vcmp.lt.s32.totalorder %v1437, 256
  %vm1470 = vcmp.lt.s32.totalorder %v1438, 256
  %vm1471 = vcmp.lt.s32.totalorder %v1439, 256
  %vm1472 = vcmp.lt.s32.totalorder %v1440, 256
  %vm1473 = vcmp.lt.s32.totalorder %v1441, 256
  %vm1474 = vcmp.lt.s32.totalorder %v1442, 256
  %vm1475 = vcmp.lt.s32.totalorder %v1443, 256
  %vm1476 = vcmp.lt.s32.totalorder %v1444, 256
  %vm1477 = vcmp.lt.s32.totalorder %v1445, 256
  %vm1478 = vcmp.lt.s32.totalorder %v1446, 256
  %vm1479 = vcmp.lt.s32.totalorder %v1447, 256
  %vm1480 = vcmp.lt.s32.totalorder %v1448, 256
  %vm1481 = vcmp.lt.s32.totalorder %v1449, 256
  %vm1482 = vcmp.lt.s32.totalorder %v1450, 256
  %vm1483 = vcmp.lt.s32.totalorder %v1451, 256
  %vm1484 = vcmp.lt.s32.totalorder %v1452, 256
  %vm1485 = vcmp.lt.s32.totalorder %v1453, 256
  %vm1486 = vcmp.lt.s32.totalorder %v1454, 256
  %vm1487 = vcmp.lt.s32.totalorder %v1455, 256
  %vm1488 = vcmp.lt.s32.totalorder %v1456, 256
  %vm1489 = vcmp.lt.s32.totalorder %v1457, 256
  %vm1490 = vcmp.lt.s32.totalorder %v1458, 256
  %v1491 = vsel %vm1459, %v1328, 0.0
  %v1492 = vsel %vm1460, %v1329, 0.0
  %v1493 = vsel %vm1461, %v1330, 0.0
  %v1494 = vsel %vm1462, %v1331, 0.0
  %v1495 = vsel %vm1463, %v1332, 0.0
  %v1496 = vsel %vm1464, %v1333, 0.0
  %v1497 = vsel %vm1465, %v1334, 0.0
  %v1498 = vsel %vm1466, %v1335, 0.0
  %v1499 = vsel %vm1467, %v1336, 0.0
  %v1500 = vsel %vm1468, %v1337, 0.0
  %v1501 = vsel %vm1469, %v1338, 0.0
  %v1502 = vsel %vm1470, %v1339, 0.0
  %v1503 = vsel %vm1471, %v1340, 0.0
  %v1504 = vsel %vm1472, %v1341, 0.0
  %v1505 = vsel %vm1473, %v1342, 0.0
  %v1506 = vsel %vm1474, %v1343, 0.0
  %v1507 = vsel %vm1475, %v1344, 0.0
  %v1508 = vsel %vm1476, %v1345, 0.0
  %v1509 = vsel %vm1477, %v1346, 0.0
  %v1510 = vsel %vm1478, %v1347, 0.0
  %v1511 = vsel %vm1479, %v1348, 0.0
  %v1512 = vsel %vm1480, %v1349, 0.0
  %v1513 = vsel %vm1481, %v1350, 0.0
  %v1514 = vsel %vm1482, %v1351, 0.0
  %v1515 = vsel %vm1483, %v1352, 0.0
  %v1516 = vsel %vm1484, %v1353, 0.0
  %v1517 = vsel %vm1485, %v1354, 0.0
  %v1518 = vsel %vm1486, %v1355, 0.0
  %v1519 = vsel %vm1487, %v1356, 0.0
  %v1520 = vsel %vm1488, %v1357, 0.0
  %v1521 = vsel %vm1489, %v1358, 0.0
  %v1522 = vsel %vm1490, %v1359, 0.0
  %v1523 = vadd.f32 %v1491, %v1492
  %v1524 = vadd.f32 %v1523, %v1493
  %v1525 = vadd.f32 %v1524, %v1494
  %v1526 = vadd.f32 %v1525, %v1495
  %v1527 = vadd.f32 %v1526, %v1496
  %v1528 = vadd.f32 %v1527, %v1497
  %v1529 = vadd.f32 %v1528, %v1498
  %v1530 = vadd.f32 %v1529, %v1499
  %v1531 = vadd.f32 %v1530, %v1500
  %v1532 = vadd.f32 %v1531, %v1501
  %v1533 = vadd.f32 %v1532, %v1502
  %v1534 = vadd.f32 %v1533, %v1503
  %v1535 = vadd.f32 %v1534, %v1504
  %v1536 = vadd.f32 %v1535, %v1505
  %v1537 = vadd.f32 %v1536, %v1506
  %v1538 = vadd.f32 %v1537, %v1507
  %v1539 = vadd.f32 %v1538, %v1508
  %v1540 = vadd.f32 %v1539, %v1509
  %v1541 = vadd.f32 %v1540, %v1510
  %v1542 = vadd.f32 %v1541, %v1511
  %v1543 = vadd.f32 %v1542, %v1512
  %v1544 = vadd.f32 %v1543, %v1513
  %v1545 = vadd.f32 %v1544, %v1514
  %v1546 = vadd.f32 %v1545, %v1515
  %v1547 = vadd.f32 %v1546, %v1516
  %v1548 = vadd.f32 %v1547, %v1517
  %v1549 = vadd.f32 %v1548, %v1518
  %v1550 = vadd.f32 %v1549, %v1519
  %v1551 = vadd.f32 %v1550, %v1520
  %v1552 = vadd.f32 %v1551, %v1521
  %v1553 = vadd.f32 %v1552, %v1522
  %v1554 = vrot.slane %v1553, 4
  %v1555 = vadd.f32 %v1553, %v1554
  %v1556 = vrot.slane %v1555, 2
  %v1557 = vadd.f32 %v1555, %v1556
  %v1558 = vrot.slane %v1557, 1
  %v1559 = vadd.f32 %v1557, %v1558
  %1560 = vst [vmem:[%s8] sm:$0x1] %v1559
  %v1561 = vmul.f32 %v1491, %v1491
  %v1562 = vmul.f32 %v1492, %v1492
  %v1563 = vmul.f32 %v1493, %v1493
  %v1564 = vmul.f32 %v1494, %v1494
  %v1565 = vmul.f32 %v1495, %v1495
  %v1566 = vmul.f32 %v1496, %v1496
  %v1567 = vmul.f32 %v1497, %v1497
  %v1568 = vmul.f32 %v1498, %v1498
  %v1569 = vmul.f32 %v1499, %v1499
  %v1570 = vmul.f32 %v1500, %v1500
  %v1571 = vmul.f32 %v1501, %v1501
  %v1572 = vmul.f32 %v1502, %v1502
  %v1573 = vmul.f32 %v1503, %v1503
  %v1574 = vmul.f32 %v1504, %v1504
  %v1575 = vmul.f32 %v1505, %v1505
  %v1576 = vmul.f32 %v1506, %v1506
  %v1577 = vmul.f32 %v1507, %v1507
  %v1578 = vmul.f32 %v1508, %v1508
  %v1579 = vmul.f32 %v1509, %v1509
  %v1580 = vmul.f32 %v1510, %v1510
  %v1581 = vmul.f32 %v1511, %v1511
  %v1582 = vmul.f32 %v1512, %v1512
  %v1583 = vmul.f32 %v1513, %v1513
  %v1584 = vmul.f32 %v1514, %v1514
  %v1585 = vmul.f32 %v1515, %v1515
  %v1586 = vmul.f32 %v1516, %v1516
  %v1587 = vmul.f32 %v1517, %v1517
  %v1588 = vmul.f32 %v1518, %v1518
  %v1589 = vmul.f32 %v1519, %v1519
  %v1590 = vmul.f32 %v1520, %v1520
  %v1591 = vmul.f32 %v1521, %v1521
  %v1592 = vmul.f32 %v1522, %v1522
  %v1593 = vadd.f32 %v1561, %v1562
  %v1594 = vadd.f32 %v1593, %v1563
  %v1595 = vadd.f32 %v1594, %v1564
  %v1596 = vadd.f32 %v1595, %v1565
  %v1597 = vadd.f32 %v1596, %v1566
  %v1598 = vadd.f32 %v1597, %v1567
  %v1599 = vadd.f32 %v1598, %v1568
  %v1600 = vadd.f32 %v1599, %v1569
  %v1601 = vadd.f32 %v1600, %v1570
  %v1602 = vadd.f32 %v1601, %v1571
  %v1603 = vadd.f32 %v1602, %v1572
  %v1604 = vadd.f32 %v1603, %v1573
  %v1605 = vadd.f32 %v1604, %v1574
  %v1606 = vadd.f32 %v1605, %v1575
  %v1607 = vadd.f32 %v1606, %v1576
  %v1608 = vadd.f32 %v1607, %v1577
  %v1609 = vadd.f32 %v1608, %v1578
  %v1610 = vadd.f32 %v1609, %v1579
  %v1611 = vadd.f32 %v1610, %v1580
  %v1612 = vadd.f32 %v1611, %v1581
  %v1613 = vadd.f32 %v1612, %v1582
  %v1614 = vadd.f32 %v1613, %v1583
  %v1615 = vadd.f32 %v1614, %v1584
  %v1616 = vadd.f32 %v1615, %v1585
  %v1617 = vadd.f32 %v1616, %v1586
  %v1618 = vadd.f32 %v1617, %v1587
  %v1619 = vadd.f32 %v1618, %v1588
  %v1620 = vadd.f32 %v1619, %v1589
  %v1621 = vadd.f32 %v1620, %v1590
  %v1622 = vadd.f32 %v1621, %v1591
  %v1623 = vadd.f32 %v1622, %v1592
  %v1624 = vrot.slane %v1623, 4
  %v1625 = vadd.f32 %v1623, %v1624
  %v1626 = vrot.slane %v1625, 2
  %v1627 = vadd.f32 %v1625, %v1626
  %v1628 = vrot.slane %v1627, 1
  %v1629 = vadd.f32 %v1627, %v1628
  %1630 = vst [vmem:[%s9] sm:$0x1] %v1629
  // Predicated region
  $region30: #{graph_iso_bn.2} parent=0 // pred_check
    _
  $region31: #{graph_iso_bn.2} parent=0 // pred_check_branch
    %1632 = sbr.rel (0) target = $region33
  $region32: #{graph_iso_bn.2} parent=0 // pred_region
    _
  $region33: #{graph_iso_bn.2} parent=0 // pred_fallthru
    _
  // Predicated region
  $region34: #{graph_iso_bn.2} parent=0 // pred_check
    _
  $region35: #{graph_iso_bn.2} parent=0 // pred_check_branch
    %1634 = sbr.rel (0) target = $region37
  $region36: #{graph_iso_bn.2} parent=0 // pred_region
    _
  $region37: #{graph_iso_bn.2} parent=0 // pred_fallthru
    _
  // Predicated region
  $region38: #{graph_iso_bn.2} parent=0 // pred_check
    _
  $region39: #{graph_iso_bn.2} parent=0 // pred_check_branch
    %1636 = sbr.rel (0) target = $region41
  $region40: #{graph_iso_bn.2} parent=0 // pred_region
    _
  $region41: #{graph_iso_bn.2} parent=0 // pred_fallthru
    _
  // Predicated region
  $region42: #{graph_iso_bn.2} parent=0 // pred_check
    _
  $region43: #{graph_iso_bn.2} parent=0 // pred_check_branch
    %1638 = sbr.rel (0) target = $region45
  $region44: #{graph_iso_bn.2} parent=0 // pred_region
    _
  $region45: #{graph_iso_bn.2} parent=0 // pred_fallthru
    _
  // Predicated region
  $region46: #{graph_iso_bn.2} parent=0 // pred_check
    _
  $region47: #{graph_iso_bn.2} parent=0 // pred_check_branch
    %1640 = sbr.rel (0) target = $region49
  $region48: #{graph_iso_bn.2} parent=0 // pred_region
    _
  $region49: #{graph_iso_bn.2} parent=0 // pred_fallthru
    _
  // Predicated region
  $region50: #{graph_iso_bn.2} parent=0 // pred_check
    _
  $region51: #{graph_iso_bn.2} parent=0 // pred_check_branch
    %1642 = sbr.rel (0) target = $region53
  $region52: #{graph_iso_bn.2} parent=0 // pred_region
    _
  $region53: #{graph_iso_bn.2} parent=0 // pred_fallthru
    _

</llo_original>
